<compile_context>
chip_gen: v7x
topology: tpu7x:2x2x1
jax: 0.10.0
libtpu: 0.0.40
codegen_flags: <defaults>
</compile_context>

<pallas_src>
import functools

import jax
import jax.numpy as jnp
from jax.experimental import pallas as pl
from jax.experimental.pallas import tpu as pltpu


def _round_up(x, m):
    return (x + m - 1) // m * m


def _pad_to(a, shape):
    pads = [(0, s - d) for d, s in zip(a.shape, shape)]
    return jnp.pad(a, pads)


def fcnet_kernel(x_ref,
                 w0_ref, w1_ref, w2_ref, w3_ref, w4_ref,
                 b_ref,
                 out_ref):
    """All five fully-connected layers fused; weights bf16, accumulation f32."""
    n1 = w0_ref.shape[1]
    n2 = w1_ref.shape[1]
    n3 = w2_ref.shape[1]
    n4 = w3_ref.shape[1]
    no = w4_ref.shape[1]
    o1 = n1
    o2 = o1 + n2
    o3 = o2 + n3
    o4 = o3 + n4

    def fc(h, w_ref, b_off, b_n):
        # bf16 inputs on the MXU, f32 accumulate; bias add stays f32 (VPU).
        acc = jnp.dot(h.astype(jnp.bfloat16), w_ref[...],
                      preferred_element_type=jnp.float32)
        return acc + b_ref[:, b_off:b_off + b_n]

    h = x_ref[...]                                    # (tm, K0) f32
    h = jnp.maximum(fc(h, w0_ref, 0, n1), 0.0)        # fc0 + ReLU
    h = jnp.maximum(fc(h, w1_ref, o1, n2), 0.0)       # fc1 + ReLU
    h = jnp.maximum(fc(h, w2_ref, o2, n3), 0.0)       # fc2 + ReLU
    h = jnp.maximum(fc(h, w3_ref, o3, n4), 0.0)       # fc3 + ReLU
    out_ref[...] = fc(h, w4_ref, o4, no).astype(out_ref.dtype)  # fc4 (linear)


FC1_PAD_TO = 256    # 196 -> 256 (multiple of 128)
OUT_PAD_TO = 128    # 10  -> 128 (lane-dense output)


@functools.partial(jax.jit, static_argnames=())
def fcnet_forward(x_nchw, params):
    """x_nchw: (B, C, H, W) float32.  params: list of (W_(in,out), b_(1,out))."""
    B = x_nchw.shape[0]
    x_flat = x_nchw.reshape(B, -1).astype(jnp.float32)   # torch .view(B, -1) order
    k0 = x_flat.shape[1]

    (w0, b0), (w1, b1), (w2, b2), (w3, b3), (w4, b4) = params
    n1 = FC1_PAD_TO
    n2 = w1.shape[1]
    n_out = w4.shape[1]
    n_out_pad = OUT_PAD_TO

    # Pad ragged dims and cast weights to bf16 (zero-padding is semantics-neutral:
    # padded fc0 lanes stay 0 through ReLU, padded w1 rows are zero, padded output
    # lanes are sliced off below).
    w0p = _pad_to(w0, (k0, n1)).astype(jnp.bfloat16)
    w1p = _pad_to(w1, (n1, n2)).astype(jnp.bfloat16)
    w2p = w2.astype(jnp.bfloat16)
    w3p = w3.astype(jnp.bfloat16)
    w4p = _pad_to(w4, (n2, n_out_pad)).astype(jnp.bfloat16)

    # Single concatenated f32 bias row: [b0(256) | b1(256) | b2(256) | b3(256) | b4(128)]
    b_all = jnp.concatenate([
        _pad_to(b0.reshape(1, -1), (1, n1)),
        b1.reshape(1, -1),
        b2.reshape(1, -1),
        b3.reshape(1, -1),
        _pad_to(b4.reshape(1, -1), (1, n_out_pad)),
    ], axis=1).astype(jnp.float32)
    nb = b_all.shape[1]

    # Batch tiling: pad rows to a multiple of 8 sublanes; tile at 128 rows when
    # the batch is large enough, and split tiles across TensorCores (v7x).
    tm = 128 if B >= 128 else _round_up(B, 8)
    b_pad = _round_up(B, tm)
    x_pad = _pad_to(x_flat, (b_pad, k0))
    grid = (b_pad // tm,)

    def wspec(shape):
        # Constant index_map -> weights stay resident in VMEM across grid steps.
        return pl.BlockSpec(shape, lambda i: (0, 0))

    out_padded = pl.pallas_call(
        fcnet_kernel,
        out_shape=jax.ShapeDtypeStruct((b_pad, n_out_pad), jnp.float32),
        grid_spec=pltpu.PrefetchScalarGridSpec(
            num_scalar_prefetch=0,
            grid=grid,
            in_specs=[
                pl.BlockSpec((tm, k0), lambda i: (i, 0)),   # x tile per grid step
                wspec((k0, n1)),
                wspec((n1, n2)),
                wspec((n2, n2)),
                wspec((n2, n2)),
                wspec((n2, n_out_pad)),
                wspec((1, nb)),
            ],
            out_specs=pl.BlockSpec((tm, n_out_pad), lambda i: (i, 0)),
        ),
        compiler_params=pltpu.CompilerParams(
            dimension_semantics=("parallel",),
            vmem_limit_bytes=32 << 20,   # well under v7x's 64 MiB physical VMEM
        ),
    )(x_pad, w0p, w1p, w2p, w3p, w4p, b_all)

    return out_padded[:B, :n_out]


def init_linear(key, fan_in, fan_out):
    """Deterministic init mimicking nn.Linear default (uniform +/- 1/sqrt(fan_in))."""
    kw, kb = jax.random.split(key)
    bound = 1.0 / jnp.sqrt(fan_in)
    w = jax.random.uniform(kw, (fan_in, fan_out), jnp.float32, -bound, bound)
    b = jax.random.uniform(kb, (1, fan_out), jnp.float32, -bound, bound)
    return w, b


if __name__ == "__main__":
    # Small shapes consistent with the module: input_shape=(4, 16, 16), filter_frac=0.25
    B = 2
    C, H, W = 4, 16, 16
    filter_frac = 0.25
    num_input_channels = C * H * W                  # 1024
    num_filters1 = round(784 * filter_frac)         # 196
    num_filters2 = round(1024 * filter_frac)        # 256
    num_classes = 10

    key = jax.random.PRNGKey(0)
    kx, k0, k1, k2, k3, k4 = jax.random.split(key, 6)

    x = jax.random.normal(kx, (B, C, H, W), jnp.float32)

    params = [
        init_linear(k0, num_input_channels, num_filters1),
        init_linear(k1, num_filters1, num_filters2),
        init_linear(k2, num_filters2, num_filters2),
        init_linear(k3, num_filters2, num_filters2),
        init_linear(k4, num_filters2, num_classes),
    ]

    out = fcnet_forward(x, params)
    out = jax.block_until_ready(out)
    assert out.shape == (B, num_classes)

    # Reference with the same bf16-weight / f32-accumulate numerics as the kernel.
    h = x.reshape(B, -1)
    for i, (w, b) in enumerate(params):
        h = jnp.dot(h.astype(jnp.bfloat16), w.astype(jnp.bfloat16),
                    preferred_element_type=jnp.float32) + b.reshape(1, -1)
        if i < len(params) - 1:
            h = jnp.maximum(h, 0.0)
    assert jnp.allclose(out, h, atol=1e-2, rtol=1e-2), "mismatch vs bf16 reference"

    # Loose sanity check against the full-f32 reference (bf16 weights are a
    # deliberate precision/perf tradeoff).
    h32 = x.reshape(B, -1)
    for i, (w, b) in enumerate(params):
        h32 = h32 @ w + b
        if i < len(params) - 1:
            h32 = jnp.maximum(h32, 0.0)
    assert jnp.allclose(out, h32, atol=0.1, rtol=0.1), "diverged from f32 reference"

    print("KERNEL_OK")
</pallas_src>

<mosaic_0001>
module attributes {stable_mosaic.version = 11 : i64} {
  func.func @fcnet_kernel(%arg0: i32, %arg1: memref<8x1024xf32, #tpu.memory_space<vmem>>, %arg2: memref<1024x256xbf16, #tpu.memory_space<vmem>>, %arg3: memref<256x256xbf16, #tpu.memory_space<vmem>>, %arg4: memref<256x256xbf16, #tpu.memory_space<vmem>>, %arg5: memref<256x256xbf16, #tpu.memory_space<vmem>>, %arg6: memref<256x128xbf16, #tpu.memory_space<vmem>>, %arg7: memref<1x1152xf32, #tpu.memory_space<vmem>>, %arg8: memref<8x128xf32, #tpu.memory_space<vmem>>) attributes {dimension_semantics = [#tpu.dimension_semantics<parallel>], iteration_bounds = array<i64: 1>, scalar_prefetch = 0 : i64, scratch_operands = 0 : i64, tpu.core_type = #tpu.core_type<tc>, window_params = [{transform_indices = @transform_0, window_bounds = array<i64: 8, 1024>}, {pipeline_mode = #tpu.pipeline_mode<synchronous>, transform_indices = @transform_1, window_bounds = array<i64: 1024, 256>}, {pipeline_mode = #tpu.pipeline_mode<synchronous>, transform_indices = @transform_2, window_bounds = array<i64: 256, 256>}, {pipeline_mode = #tpu.pipeline_mode<synchronous>, transform_indices = @transform_3, window_bounds = array<i64: 256, 256>}, {pipeline_mode = #tpu.pipeline_mode<synchronous>, transform_indices = @transform_4, window_bounds = array<i64: 256, 256>}, {pipeline_mode = #tpu.pipeline_mode<synchronous>, transform_indices = @transform_5, window_bounds = array<i64: 256, 128>}, {pipeline_mode = #tpu.pipeline_mode<synchronous>, transform_indices = @transform_6, window_bounds = array<i64: 1, 1152>}, {transform_indices = @transform_7, window_bounds = array<i64: 8, 128>}]} {
    %c0 = arith.constant 0 : index
    %c0_0 = arith.constant 0 : index
    %0 = vector.load %arg1[%c0, %c0_0] : memref<8x1024xf32, #tpu.memory_space<vmem>>, vector<8x1024xf32>
    %1 = arith.truncf %0 : vector<8x1024xf32> to vector<8x1024xbf16>
    %c0_1 = arith.constant 0 : index
    %c0_2 = arith.constant 0 : index
    %2 = vector.load %arg2[%c0_1, %c0_2] : memref<1024x256xbf16, #tpu.memory_space<vmem>>, vector<1024x256xbf16>
    %cst = arith.constant dense<0.000000e+00> : vector<8x256xf32>
    %3 = tpu.matmul %1, %2, %cst {dimension_numbers = #tpu.dot_dimension_numbers<[1], [0], [0], [1], [0, 0, 1, 1], [], []>} : vector<8x1024xbf16>, vector<1024x256xbf16>, vector<8x256xf32> -> vector<8x256xf32>
    %c0_3 = arith.constant 0 : index
    %c0_4 = arith.constant 0 : index
    %4 = vector.load %arg7[%c0_3, %c0_4] : memref<1x1152xf32, #tpu.memory_space<vmem>>, vector<1x256xf32>
    %5 = vector.broadcast %4 : vector<1x256xf32> to vector<8x256xf32>
    %6 = arith.addf %3, %5 : vector<8x256xf32>
    %cst_5 = arith.constant 0.000000e+00 : f32
    %7 = vector.broadcast %cst_5 : f32 to vector<8x256xf32>
    %8 = arith.maximumf %6, %7 : vector<8x256xf32>
    %9 = arith.truncf %8 : vector<8x256xf32> to vector<8x256xbf16>
    %c0_6 = arith.constant 0 : index
    %c0_7 = arith.constant 0 : index
    %10 = vector.load %arg3[%c0_6, %c0_7] : memref<256x256xbf16, #tpu.memory_space<vmem>>, vector<256x256xbf16>
    %cst_8 = arith.constant dense<0.000000e+00> : vector<8x256xf32>
    %11 = tpu.matmul %9, %10, %cst_8 {dimension_numbers = #tpu.dot_dimension_numbers<[1], [0], [0], [1], [0, 0, 1, 1], [], []>} : vector<8x256xbf16>, vector<256x256xbf16>, vector<8x256xf32> -> vector<8x256xf32>
    %c0_9 = arith.constant 0 : index
    %c256 = arith.constant 256 : index
    %12 = vector.load %arg7[%c0_9, %c256] : memref<1x1152xf32, #tpu.memory_space<vmem>>, vector<1x256xf32>
    %13 = vector.broadcast %12 : vector<1x256xf32> to vector<8x256xf32>
    %14 = arith.addf %11, %13 : vector<8x256xf32>
    %cst_10 = arith.constant 0.000000e+00 : f32
    %15 = vector.broadcast %cst_10 : f32 to vector<8x256xf32>
    %16 = arith.maximumf %14, %15 : vector<8x256xf32>
    %17 = arith.truncf %16 : vector<8x256xf32> to vector<8x256xbf16>
    %c0_11 = arith.constant 0 : index
    %c0_12 = arith.constant 0 : index
    %18 = vector.load %arg4[%c0_11, %c0_12] : memref<256x256xbf16, #tpu.memory_space<vmem>>, vector<256x256xbf16>
    %cst_13 = arith.constant dense<0.000000e+00> : vector<8x256xf32>
    %19 = tpu.matmul %17, %18, %cst_13 {dimension_numbers = #tpu.dot_dimension_numbers<[1], [0], [0], [1], [0, 0, 1, 1], [], []>} : vector<8x256xbf16>, vector<256x256xbf16>, vector<8x256xf32> -> vector<8x256xf32>
    %c0_14 = arith.constant 0 : index
    %c512 = arith.constant 512 : index
    %20 = vector.load %arg7[%c0_14, %c512] : memref<1x1152xf32, #tpu.memory_space<vmem>>, vector<1x256xf32>
    %21 = vector.broadcast %20 : vector<1x256xf32> to vector<8x256xf32>
    %22 = arith.addf %19, %21 : vector<8x256xf32>
    %cst_15 = arith.constant 0.000000e+00 : f32
    %23 = vector.broadcast %cst_15 : f32 to vector<8x256xf32>
    %24 = arith.maximumf %22, %23 : vector<8x256xf32>
    %25 = arith.truncf %24 : vector<8x256xf32> to vector<8x256xbf16>
    %c0_16 = arith.constant 0 : index
    %c0_17 = arith.constant 0 : index
    %26 = vector.load %arg5[%c0_16, %c0_17] : memref<256x256xbf16, #tpu.memory_space<vmem>>, vector<256x256xbf16>
    %cst_18 = arith.constant dense<0.000000e+00> : vector<8x256xf32>
    %27 = tpu.matmul %25, %26, %cst_18 {dimension_numbers = #tpu.dot_dimension_numbers<[1], [0], [0], [1], [0, 0, 1, 1], [], []>} : vector<8x256xbf16>, vector<256x256xbf16>, vector<8x256xf32> -> vector<8x256xf32>
    %c0_19 = arith.constant 0 : index
    %c768 = arith.constant 768 : index
    %28 = vector.load %arg7[%c0_19, %c768] : memref<1x1152xf32, #tpu.memory_space<vmem>>, vector<1x256xf32>
    %29 = vector.broadcast %28 : vector<1x256xf32> to vector<8x256xf32>
    %30 = arith.addf %27, %29 : vector<8x256xf32>
    %cst_20 = arith.constant 0.000000e+00 : f32
    %31 = vector.broadcast %cst_20 : f32 to vector<8x256xf32>
    %32 = arith.maximumf %30, %31 : vector<8x256xf32>
    %33 = arith.truncf %32 : vector<8x256xf32> to vector<8x256xbf16>
    %c0_21 = arith.constant 0 : index
    %c0_22 = arith.constant 0 : index
    %34 = vector.load %arg6[%c0_21, %c0_22] : memref<256x128xbf16, #tpu.memory_space<vmem>>, vector<256x128xbf16>
    %cst_23 = arith.constant dense<0.000000e+00> : vector<8x128xf32>
    %35 = tpu.matmul %33, %34, %cst_23 {dimension_numbers = #tpu.dot_dimension_numbers<[1], [0], [0], [1], [0, 0, 1, 1], [], []>} : vector<8x256xbf16>, vector<256x128xbf16>, vector<8x128xf32> -> vector<8x128xf32>
    %c0_24 = arith.constant 0 : index
    %c1024 = arith.constant 1024 : index
    %36 = vector.load %arg7[%c0_24, %c1024] : memref<1x1152xf32, #tpu.memory_space<vmem>>, vector<1x128xf32>
    %37 = vector.broadcast %36 : vector<1x128xf32> to vector<8x128xf32>
    %38 = arith.addf %35, %37 : vector<8x128xf32>
    %c0_25 = arith.constant 0 : index
    %c0_26 = arith.constant 0 : index
    %39 = vector.load %arg8[%c0_25, %c0_26] : memref<8x128xf32, #tpu.memory_space<vmem>>, vector<8x128xf32>
    tpu.vector_store %arg8[%c0_25, %c0_26], %38 {strides = array<i32>} : memref<8x128xf32, #tpu.memory_space<vmem>>, vector<8x128xf32>,
    return
  }
  func.func @transform_0(%arg0: i32) -> (i32, i32) {
    %c0_i32 = arith.constant 0 : i32
    %c0_i32_0 = arith.constant 0 : i32
    return %arg0, %c0_i32 : i32, i32
  }
  func.func @transform_1(%arg0: i32) -> (i32, i32) {
    %c0_i32 = arith.constant 0 : i32
    %c0_i32_0 = arith.constant 0 : i32
    %c0_i32_1 = arith.constant 0 : i32
    return %c0_i32, %c0_i32_0 : i32, i32
  }
  func.func @transform_2(%arg0: i32) -> (i32, i32) {
    %c0_i32 = arith.constant 0 : i32
    %c0_i32_0 = arith.constant 0 : i32
    %c0_i32_1 = arith.constant 0 : i32
    return %c0_i32, %c0_i32_0 : i32, i32
  }
  func.func @transform_3(%arg0: i32) -> (i32, i32) {
    %c0_i32 = arith.constant 0 : i32
    %c0_i32_0 = arith.constant 0 : i32
    %c0_i32_1 = arith.constant 0 : i32
    return %c0_i32, %c0_i32_0 : i32, i32
  }
  func.func @transform_4(%arg0: i32) -> (i32, i32) {
    %c0_i32 = arith.constant 0 : i32
    %c0_i32_0 = arith.constant 0 : i32
    %c0_i32_1 = arith.constant 0 : i32
    return %c0_i32, %c0_i32_0 : i32, i32
  }
  func.func @transform_5(%arg0: i32) -> (i32, i32) {
    %c0_i32 = arith.constant 0 : i32
    %c0_i32_0 = arith.constant 0 : i32
    %c0_i32_1 = arith.constant 0 : i32
    return %c0_i32, %c0_i32_0 : i32, i32
  }
  func.func @transform_6(%arg0: i32) -> (i32, i32) {
    %c0_i32 = arith.constant 0 : i32
    %c0_i32_0 = arith.constant 0 : i32
    %c0_i32_1 = arith.constant 0 : i32
    return %c0_i32, %c0_i32_0 : i32, i32
  }
  func.func @transform_7(%arg0: i32) -> (i32, i32) {
    %c0_i32 = arith.constant 0 : i32
    %c0_i32_0 = arith.constant 0 : i32
    return %arg0, %c0_i32 : i32, i32
  }
}

</mosaic_0001>

<llo_original>
// kernel: fcnet_forward.1
$region0: #{fcnet_forward.1}
  #allocation0 [shape = 'u32[]', space=smem, size = 0x4, offset = 0x4, fixed_abs, tag = 'smem constant byte address 0x4 - core index']
  #allocation1 [shape = 'u32[144,128]{1,0:T(1,128)}', space=vmem, size = 0x12000, scoped, tag = 'internal scratch']
  %s0 = inlined_call_operand.vmem [shape: f32[8,1024], index: 0, kind: input, shape index: {}]
  %s1 = inlined_call_operand.vmem [shape: bf16[1024,256], index: 1, kind: input, shape index: {}]
  %s2 = inlined_call_operand.vmem [shape: bf16[256,256], index: 2, kind: input, shape index: {}]
  %s3 = inlined_call_operand.vmem [shape: bf16[256,256], index: 3, kind: input, shape index: {}]
  %s4 = inlined_call_operand.vmem [shape: bf16[256,256], index: 4, kind: input, shape index: {}]
  %s5 = inlined_call_operand.vmem [shape: bf16[256,128], index: 5, kind: input, shape index: {}]
  %s6 = inlined_call_operand.vmem [shape: f32[1,1152], index: 6, kind: input, shape index: {}]
  %s7 = inlined_call_operand.vmem [shape: f32[8,128], index: 7, kind: output, shape index: {}]
  %s8 = sld [smem:[#allocation0]]
  $region38: #{fcnet_forward.1} parent=0
    _
  %s10 = ssub.s32 1, %s8
  %s11 = scalar_select 0, %s10, %s8
  // Predicated region
  $region2: #{fcnet_forward.1} parent=0 // pred_check
    _
  $region3: #{fcnet_forward.1} parent=0 // pred_check_branch
    %13 = sbr.rel (0) target = $region5
  $region4: #{fcnet_forward.1} parent=0 // pred_region
    _
  $region5: #{fcnet_forward.1} parent=0 // pred_fallthru
    _
  // Predicated region
  $region6: #{fcnet_forward.1} parent=0 // pred_check
    _
  $region7: #{fcnet_forward.1} parent=0 // pred_check_branch
    %15 = sbr.rel (0) target = $region9
  $region8: #{fcnet_forward.1} parent=0 // pred_region
    _
  $region9: #{fcnet_forward.1} parent=0 // pred_fallthru
    _
  // Predicated region
  $region10: #{fcnet_forward.1} parent=0 // pred_check
    _
  $region11: #{fcnet_forward.1} parent=0 // pred_check_branch
    %17 = sbr.rel (0) target = $region13
  $region12: #{fcnet_forward.1} parent=0 // pred_region
    _
  $region13: #{fcnet_forward.1} parent=0 // pred_fallthru
    _
  // Predicated region
  $region14: #{fcnet_forward.1} parent=0 // pred_check
    _
  $region15: #{fcnet_forward.1} parent=0 // pred_check_branch
    %19 = sbr.rel (0) target = $region17
  $region16: #{fcnet_forward.1} parent=0 // pred_region
    _
  $region17: #{fcnet_forward.1} parent=0 // pred_fallthru
    _
  // Predicated region
  $region18: #{fcnet_forward.1} parent=0 // pred_check
    _
  $region19: #{fcnet_forward.1} parent=0 // pred_check_branch
    %21 = sbr.rel (0) target = $region21
  $region20: #{fcnet_forward.1} parent=0 // pred_region
    _
  $region21: #{fcnet_forward.1} parent=0 // pred_fallthru
    _
  // Predicated region
  $region22: #{fcnet_forward.1} parent=0 // pred_check
    _
  $region23: #{fcnet_forward.1} parent=0 // pred_check_branch
    %23 = sbr.rel (0) target = $region25
  $region24: #{fcnet_forward.1} parent=0 // pred_region
    _
  $region25: #{fcnet_forward.1} parent=0 // pred_fallthru
    _
  // Predicated region
  $region26: #{fcnet_forward.1} parent=0 // pred_check
    _
  $region27: #{fcnet_forward.1} parent=0 // pred_check_branch
    %25 = sbr.rel (0) target = $region29
  $region28: #{fcnet_forward.1} parent=0 // pred_region
    _
  $region29: #{fcnet_forward.1} parent=0 // pred_fallthru
    _
  %v27 = vld [vmem:[%s0] sm:$0xff]
  %v28 = vld [vmem:[%s0 + $0x8] sm:$0xff]
  %v29 = vld [vmem:[%s0 + $0x10] sm:$0xff]
  %v30 = vld [vmem:[%s0 + $0x18] sm:$0xff]
  %v31 = vld [vmem:[%s0 + $0x20] sm:$0xff]
  %v32 = vld [vmem:[%s0 + $0x28] sm:$0xff]
  %v33 = vld [vmem:[%s0 + $0x30] sm:$0xff]
  %v34 = vld [vmem:[%s0 + $0x38] sm:$0xff]
  %v35 = vpack.c.bf16 %v27, %v27
  %v36 = vpack.c.bf16 %v28, %v28
  %v37 = vpack.c.bf16 %v29, %v29
  %v38 = vpack.c.bf16 %v30, %v30
  %v39 = vpack.c.bf16 %v31, %v31
  %v40 = vpack.c.bf16 %v32, %v32
  %v41 = vpack.c.bf16 %v33, %v33
  %v42 = vpack.c.bf16 %v34, %v34
  %v43 = vld [vmem:[%s1] sm:$0xff]
  %v44 = vld [vmem:[%s1 + $0x8] sm:$0xff]
  %v45 = vld [vmem:[%s1 + $0x10] sm:$0xff]
  %v46 = vld [vmem:[%s1 + $0x18] sm:$0xff]
  %v47 = vld [vmem:[%s1 + $0x20] sm:$0xff]
  %v48 = vld [vmem:[%s1 + $0x28] sm:$0xff]
  %v49 = vld [vmem:[%s1 + $0x30] sm:$0xff]
  %v50 = vld [vmem:[%s1 + $0x38] sm:$0xff]
  %v51 = vld [vmem:[%s1 + $0x40] sm:$0xff]
  %v52 = vld [vmem:[%s1 + $0x48] sm:$0xff]
  %v53 = vld [vmem:[%s1 + $0x50] sm:$0xff]
  %v54 = vld [vmem:[%s1 + $0x58] sm:$0xff]
  %v55 = vld [vmem:[%s1 + $0x60] sm:$0xff]
  %v56 = vld [vmem:[%s1 + $0x68] sm:$0xff]
  %v57 = vld [vmem:[%s1 + $0x70] sm:$0xff]
  %v58 = vld [vmem:[%s1 + $0x78] sm:$0xff]
  %v59 = vld [vmem:[%s1 + $0x80] sm:$0xff]
  %v60 = vld [vmem:[%s1 + $0x88] sm:$0xff]
  %v61 = vld [vmem:[%s1 + $0x90] sm:$0xff]
  %v62 = vld [vmem:[%s1 + $0x98] sm:$0xff]
  %v63 = vld [vmem:[%s1 + $0xa0] sm:$0xff]
  %v64 = vld [vmem:[%s1 + $0xa8] sm:$0xff]
  %v65 = vld [vmem:[%s1 + $0xb0] sm:$0xff]
  %v66 = vld [vmem:[%s1 + $0xb8] sm:$0xff]
  %v67 = vld [vmem:[%s1 + $0xc0] sm:$0xff]
  %v68 = vld [vmem:[%s1 + $0xc8] sm:$0xff]
  %v69 = vld [vmem:[%s1 + $0xd0] sm:$0xff]
  %v70 = vld [vmem:[%s1 + $0xd8] sm:$0xff]
  %v71 = vld [vmem:[%s1 + $0xe0] sm:$0xff]
  %v72 = vld [vmem:[%s1 + $0xe8] sm:$0xff]
  %v73 = vld [vmem:[%s1 + $0xf0] sm:$0xff]
  %v74 = vld [vmem:[%s1 + $0xf8] sm:$0xff]
  %v75 = vld [vmem:[%s1 + $0x100] sm:$0xff]
  %v76 = vld [vmem:[%s1 + $0x108] sm:$0xff]
  %v77 = vld [vmem:[%s1 + $0x110] sm:$0xff]
  %v78 = vld [vmem:[%s1 + $0x118] sm:$0xff]
  %v79 = vld [vmem:[%s1 + $0x120] sm:$0xff]
  %v80 = vld [vmem:[%s1 + $0x128] sm:$0xff]
  %v81 = vld [vmem:[%s1 + $0x130] sm:$0xff]
  %v82 = vld [vmem:[%s1 + $0x138] sm:$0xff]
  %v83 = vld [vmem:[%s1 + $0x140] sm:$0xff]
  %v84 = vld [vmem:[%s1 + $0x148] sm:$0xff]
  %v85 = vld [vmem:[%s1 + $0x150] sm:$0xff]
  %v86 = vld [vmem:[%s1 + $0x158] sm:$0xff]
  %v87 = vld [vmem:[%s1 + $0x160] sm:$0xff]
  %v88 = vld [vmem:[%s1 + $0x168] sm:$0xff]
  %v89 = vld [vmem:[%s1 + $0x170] sm:$0xff]
  %v90 = vld [vmem:[%s1 + $0x178] sm:$0xff]
  %v91 = vld [vmem:[%s1 + $0x180] sm:$0xff]
  %v92 = vld [vmem:[%s1 + $0x188] sm:$0xff]
  %v93 = vld [vmem:[%s1 + $0x190] sm:$0xff]
  %v94 = vld [vmem:[%s1 + $0x198] sm:$0xff]
  %v95 = vld [vmem:[%s1 + $0x1a0] sm:$0xff]
  %v96 = vld [vmem:[%s1 + $0x1a8] sm:$0xff]
  %v97 = vld [vmem:[%s1 + $0x1b0] sm:$0xff]
  %v98 = vld [vmem:[%s1 + $0x1b8] sm:$0xff]
  %v99 = vld [vmem:[%s1 + $0x1c0] sm:$0xff]
  %v100 = vld [vmem:[%s1 + $0x1c8] sm:$0xff]
  %v101 = vld [vmem:[%s1 + $0x1d0] sm:$0xff]
  %v102 = vld [vmem:[%s1 + $0x1d8] sm:$0xff]
  %v103 = vld [vmem:[%s1 + $0x1e0] sm:$0xff]
  %v104 = vld [vmem:[%s1 + $0x1e8] sm:$0xff]
  %v105 = vld [vmem:[%s1 + $0x1f0] sm:$0xff]
  %v106 = vld [vmem:[%s1 + $0x1f8] sm:$0xff]
  %v107 = vld [vmem:[%s1 + $0x200] sm:$0xff]
  %v108 = vld [vmem:[%s1 + $0x208] sm:$0xff]
  %v109 = vld [vmem:[%s1 + $0x210] sm:$0xff]
  %v110 = vld [vmem:[%s1 + $0x218] sm:$0xff]
  %v111 = vld [vmem:[%s1 + $0x220] sm:$0xff]
  %v112 = vld [vmem:[%s1 + $0x228] sm:$0xff]
  %v113 = vld [vmem:[%s1 + $0x230] sm:$0xff]
  %v114 = vld [vmem:[%s1 + $0x238] sm:$0xff]
  %v115 = vld [vmem:[%s1 + $0x240] sm:$0xff]
  %v116 = vld [vmem:[%s1 + $0x248] sm:$0xff]
  %v117 = vld [vmem:[%s1 + $0x250] sm:$0xff]
  %v118 = vld [vmem:[%s1 + $0x258] sm:$0xff]
  %v119 = vld [vmem:[%s1 + $0x260] sm:$0xff]
  %v120 = vld [vmem:[%s1 + $0x268] sm:$0xff]
  %v121 = vld [vmem:[%s1 + $0x270] sm:$0xff]
  %v122 = vld [vmem:[%s1 + $0x278] sm:$0xff]
  %v123 = vld [vmem:[%s1 + $0x280] sm:$0xff]
  %v124 = vld [vmem:[%s1 + $0x288] sm:$0xff]
  %v125 = vld [vmem:[%s1 + $0x290] sm:$0xff]
  %v126 = vld [vmem:[%s1 + $0x298] sm:$0xff]
  %v127 = vld [vmem:[%s1 + $0x2a0] sm:$0xff]
  %v128 = vld [vmem:[%s1 + $0x2a8] sm:$0xff]
  %v129 = vld [vmem:[%s1 + $0x2b0] sm:$0xff]
  %v130 = vld [vmem:[%s1 + $0x2b8] sm:$0xff]
  %v131 = vld [vmem:[%s1 + $0x2c0] sm:$0xff]
  %v132 = vld [vmem:[%s1 + $0x2c8] sm:$0xff]
  %v133 = vld [vmem:[%s1 + $0x2d0] sm:$0xff]
  %v134 = vld [vmem:[%s1 + $0x2d8] sm:$0xff]
  %v135 = vld [vmem:[%s1 + $0x2e0] sm:$0xff]
  %v136 = vld [vmem:[%s1 + $0x2e8] sm:$0xff]
  %v137 = vld [vmem:[%s1 + $0x2f0] sm:$0xff]
  %v138 = vld [vmem:[%s1 + $0x2f8] sm:$0xff]
  %v139 = vld [vmem:[%s1 + $0x300] sm:$0xff]
  %v140 = vld [vmem:[%s1 + $0x308] sm:$0xff]
  %v141 = vld [vmem:[%s1 + $0x310] sm:$0xff]
  %v142 = vld [vmem:[%s1 + $0x318] sm:$0xff]
  %v143 = vld [vmem:[%s1 + $0x320] sm:$0xff]
  %v144 = vld [vmem:[%s1 + $0x328] sm:$0xff]
  %v145 = vld [vmem:[%s1 + $0x330] sm:$0xff]
  %v146 = vld [vmem:[%s1 + $0x338] sm:$0xff]
  %v147 = vld [vmem:[%s1 + $0x340] sm:$0xff]
  %v148 = vld [vmem:[%s1 + $0x348] sm:$0xff]
  %v149 = vld [vmem:[%s1 + $0x350] sm:$0xff]
  %v150 = vld [vmem:[%s1 + $0x358] sm:$0xff]
  %v151 = vld [vmem:[%s1 + $0x360] sm:$0xff]
  %v152 = vld [vmem:[%s1 + $0x368] sm:$0xff]
  %v153 = vld [vmem:[%s1 + $0x370] sm:$0xff]
  %v154 = vld [vmem:[%s1 + $0x378] sm:$0xff]
  %v155 = vld [vmem:[%s1 + $0x380] sm:$0xff]
  %v156 = vld [vmem:[%s1 + $0x388] sm:$0xff]
  %v157 = vld [vmem:[%s1 + $0x390] sm:$0xff]
  %v158 = vld [vmem:[%s1 + $0x398] sm:$0xff]
  %v159 = vld [vmem:[%s1 + $0x3a0] sm:$0xff]
  %v160 = vld [vmem:[%s1 + $0x3a8] sm:$0xff]
  %v161 = vld [vmem:[%s1 + $0x3b0] sm:$0xff]
  %v162 = vld [vmem:[%s1 + $0x3b8] sm:$0xff]
  %v163 = vld [vmem:[%s1 + $0x3c0] sm:$0xff]
  %v164 = vld [vmem:[%s1 + $0x3c8] sm:$0xff]
  %v165 = vld [vmem:[%s1 + $0x3d0] sm:$0xff]
  %v166 = vld [vmem:[%s1 + $0x3d8] sm:$0xff]
  %v167 = vld [vmem:[%s1 + $0x3e0] sm:$0xff]
  %v168 = vld [vmem:[%s1 + $0x3e8] sm:$0xff]
  %v169 = vld [vmem:[%s1 + $0x3f0] sm:$0xff]
  %v170 = vld [vmem:[%s1 + $0x3f8] sm:$0xff]
  %v171 = vld [vmem:[%s6] sm:$0x3]
  %v173 = vlaneseq
  %v174 = vshrl.u32 %v173, 7
  %v175 = vsub.s32 0, %v174
  %v176 = vrot.slane %v171, %v175
  %v177 = vlaneseq
  %v178 = vshrl.u32 %v177, 7
  %v179 = vsub.s32 1, %v178
  %v180 = vrot.slane %v171, %v179
  %v311 = vunpack.c.l.b16 %v43
  %v312 = vunpack.c.h.b16 %v43
  %v313 = vunpack.c.l.b16 %v44
  %v314 = vunpack.c.h.b16 %v44
  %v315 = vunpack.c.l.b16 %v45
  %v316 = vunpack.c.h.b16 %v45
  %v317 = vunpack.c.l.b16 %v46
  %v318 = vunpack.c.h.b16 %v46
  %v319 = vunpack.c.l.b16 %v47
  %v320 = vunpack.c.h.b16 %v47
  %v321 = vunpack.c.l.b16 %v48
  %v322 = vunpack.c.h.b16 %v48
  %v323 = vunpack.c.l.b16 %v49
  %v324 = vunpack.c.h.b16 %v49
  %v325 = vunpack.c.l.b16 %v50
  %v326 = vunpack.c.h.b16 %v50
  %v327 = vunpack.c.l.b16 %v51
  %v328 = vunpack.c.h.b16 %v51
  %v329 = vunpack.c.l.b16 %v52
  %v330 = vunpack.c.h.b16 %v52
  %v331 = vunpack.c.l.b16 %v53
  %v332 = vunpack.c.h.b16 %v53
  %v333 = vunpack.c.l.b16 %v54
  %v334 = vunpack.c.h.b16 %v54
  %v335 = vunpack.c.l.b16 %v55
  %v336 = vunpack.c.h.b16 %v55
  %v337 = vunpack.c.l.b16 %v56
  %v338 = vunpack.c.h.b16 %v56
  %v339 = vunpack.c.l.b16 %v57
  %v340 = vunpack.c.h.b16 %v57
  %v341 = vunpack.c.l.b16 %v58
  %v342 = vunpack.c.h.b16 %v58
  %v343 = vunpack.c.l.b16 %v59
  %v344 = vunpack.c.h.b16 %v59
  %v345 = vunpack.c.l.b16 %v60
  %v346 = vunpack.c.h.b16 %v60
  %v347 = vunpack.c.l.b16 %v61
  %v348 = vunpack.c.h.b16 %v61
  %v349 = vunpack.c.l.b16 %v62
  %v350 = vunpack.c.h.b16 %v62
  %v351 = vunpack.c.l.b16 %v63
  %v352 = vunpack.c.h.b16 %v63
  %v353 = vunpack.c.l.b16 %v64
  %v354 = vunpack.c.h.b16 %v64
  %v355 = vunpack.c.l.b16 %v65
  %v356 = vunpack.c.h.b16 %v65
  %v357 = vunpack.c.l.b16 %v66
  %v358 = vunpack.c.h.b16 %v66
  %v359 = vunpack.c.l.b16 %v67
  %v360 = vunpack.c.h.b16 %v67
  %v361 = vunpack.c.l.b16 %v68
  %v362 = vunpack.c.h.b16 %v68
  %v363 = vunpack.c.l.b16 %v69
  %v364 = vunpack.c.h.b16 %v69
  %v365 = vunpack.c.l.b16 %v70
  %v366 = vunpack.c.h.b16 %v70
  %v367 = vunpack.c.l.b16 %v71
  %v368 = vunpack.c.h.b16 %v71
  %v369 = vunpack.c.l.b16 %v72
  %v370 = vunpack.c.h.b16 %v72
  %v371 = vunpack.c.l.b16 %v73
  %v372 = vunpack.c.h.b16 %v73
  %v373 = vunpack.c.l.b16 %v74
  %v374 = vunpack.c.h.b16 %v74
  %v375 = vunpack.c.l.b16 %v75
  %v376 = vunpack.c.h.b16 %v75
  %v377 = vunpack.c.l.b16 %v76
  %v378 = vunpack.c.h.b16 %v76
  %v379 = vunpack.c.l.b16 %v77
  %v380 = vunpack.c.h.b16 %v77
  %v381 = vunpack.c.l.b16 %v78
  %v382 = vunpack.c.h.b16 %v78
  %v383 = vunpack.c.l.b16 %v79
  %v384 = vunpack.c.h.b16 %v79
  %v385 = vunpack.c.l.b16 %v80
  %v386 = vunpack.c.h.b16 %v80
  %v387 = vunpack.c.l.b16 %v81
  %v388 = vunpack.c.h.b16 %v81
  %v389 = vunpack.c.l.b16 %v82
  %v390 = vunpack.c.h.b16 %v82
  %v391 = vunpack.c.l.b16 %v83
  %v392 = vunpack.c.h.b16 %v83
  %v393 = vunpack.c.l.b16 %v84
  %v394 = vunpack.c.h.b16 %v84
  %v395 = vunpack.c.l.b16 %v85
  %v396 = vunpack.c.h.b16 %v85
  %v397 = vunpack.c.l.b16 %v86
  %v398 = vunpack.c.h.b16 %v86
  %v399 = vunpack.c.l.b16 %v87
  %v400 = vunpack.c.h.b16 %v87
  %v401 = vunpack.c.l.b16 %v88
  %v402 = vunpack.c.h.b16 %v88
  %v403 = vunpack.c.l.b16 %v89
  %v404 = vunpack.c.h.b16 %v89
  %v405 = vunpack.c.l.b16 %v90
  %v406 = vunpack.c.h.b16 %v90
  %v407 = vunpack.c.l.b16 %v91
  %v408 = vunpack.c.h.b16 %v91
  %v409 = vunpack.c.l.b16 %v92
  %v410 = vunpack.c.h.b16 %v92
  %v411 = vunpack.c.l.b16 %v93
  %v412 = vunpack.c.h.b16 %v93
  %v413 = vunpack.c.l.b16 %v94
  %v414 = vunpack.c.h.b16 %v94
  %v415 = vunpack.c.l.b16 %v95
  %v416 = vunpack.c.h.b16 %v95
  %v417 = vunpack.c.l.b16 %v96
  %v418 = vunpack.c.h.b16 %v96
  %v419 = vunpack.c.l.b16 %v97
  %v420 = vunpack.c.h.b16 %v97
  %v421 = vunpack.c.l.b16 %v98
  %v422 = vunpack.c.h.b16 %v98
  %v423 = vunpack.c.l.b16 %v99
  %v424 = vunpack.c.h.b16 %v99
  %v425 = vunpack.c.l.b16 %v100
  %v426 = vunpack.c.h.b16 %v100
  %v427 = vunpack.c.l.b16 %v101
  %v428 = vunpack.c.h.b16 %v101
  %v429 = vunpack.c.l.b16 %v102
  %v430 = vunpack.c.h.b16 %v102
  %v431 = vunpack.c.l.b16 %v103
  %v432 = vunpack.c.h.b16 %v103
  %v433 = vunpack.c.l.b16 %v104
  %v434 = vunpack.c.h.b16 %v104
  %v435 = vunpack.c.l.b16 %v105
  %v436 = vunpack.c.h.b16 %v105
  %v437 = vunpack.c.l.b16 %v106
  %v438 = vunpack.c.h.b16 %v106
  %v439 = vunpack.c.l.b16 %v107
  %v440 = vunpack.c.h.b16 %v107
  %v441 = vunpack.c.l.b16 %v108
  %v442 = vunpack.c.h.b16 %v108
  %v443 = vunpack.c.l.b16 %v109
  %v444 = vunpack.c.h.b16 %v109
  %v445 = vunpack.c.l.b16 %v110
  %v446 = vunpack.c.h.b16 %v110
  %v447 = vunpack.c.l.b16 %v111
  %v448 = vunpack.c.h.b16 %v111
  %v449 = vunpack.c.l.b16 %v112
  %v450 = vunpack.c.h.b16 %v112
  %v451 = vunpack.c.l.b16 %v113
  %v452 = vunpack.c.h.b16 %v113
  %v453 = vunpack.c.l.b16 %v114
  %v454 = vunpack.c.h.b16 %v114
  %v455 = vunpack.c.l.b16 %v115
  %v456 = vunpack.c.h.b16 %v115
  %v457 = vunpack.c.l.b16 %v116
  %v458 = vunpack.c.h.b16 %v116
  %v459 = vunpack.c.l.b16 %v117
  %v460 = vunpack.c.h.b16 %v117
  %v461 = vunpack.c.l.b16 %v118
  %v462 = vunpack.c.h.b16 %v118
  %v463 = vunpack.c.l.b16 %v119
  %v464 = vunpack.c.h.b16 %v119
  %v465 = vunpack.c.l.b16 %v120
  %v466 = vunpack.c.h.b16 %v120
  %v467 = vunpack.c.l.b16 %v121
  %v468 = vunpack.c.h.b16 %v121
  %v469 = vunpack.c.l.b16 %v122
  %v470 = vunpack.c.h.b16 %v122
  %v471 = vunpack.c.l.b16 %v123
  %v472 = vunpack.c.h.b16 %v123
  %v473 = vunpack.c.l.b16 %v124
  %v474 = vunpack.c.h.b16 %v124
  %v475 = vunpack.c.l.b16 %v125
  %v476 = vunpack.c.h.b16 %v125
  %v477 = vunpack.c.l.b16 %v126
  %v478 = vunpack.c.h.b16 %v126
  %v479 = vunpack.c.l.b16 %v127
  %v480 = vunpack.c.h.b16 %v127
  %v481 = vunpack.c.l.b16 %v128
  %v482 = vunpack.c.h.b16 %v128
  %v483 = vunpack.c.l.b16 %v129
  %v484 = vunpack.c.h.b16 %v129
  %v485 = vunpack.c.l.b16 %v130
  %v486 = vunpack.c.h.b16 %v130
  %v487 = vunpack.c.l.b16 %v131
  %v488 = vunpack.c.h.b16 %v131
  %v489 = vunpack.c.l.b16 %v132
  %v490 = vunpack.c.h.b16 %v132
  %v491 = vunpack.c.l.b16 %v133
  %v492 = vunpack.c.h.b16 %v133
  %v493 = vunpack.c.l.b16 %v134
  %v494 = vunpack.c.h.b16 %v134
  %v495 = vunpack.c.l.b16 %v135
  %v496 = vunpack.c.h.b16 %v135
  %v497 = vunpack.c.l.b16 %v136
  %v498 = vunpack.c.h.b16 %v136
  %v499 = vunpack.c.l.b16 %v137
  %v500 = vunpack.c.h.b16 %v137
  %v501 = vunpack.c.l.b16 %v138
  %v502 = vunpack.c.h.b16 %v138
  %v503 = vunpack.c.l.b16 %v139
  %v504 = vunpack.c.h.b16 %v139
  %v505 = vunpack.c.l.b16 %v140
  %v506 = vunpack.c.h.b16 %v140
  %v507 = vunpack.c.l.b16 %v141
  %v508 = vunpack.c.h.b16 %v141
  %v509 = vunpack.c.l.b16 %v142
  %v510 = vunpack.c.h.b16 %v142
  %v511 = vunpack.c.l.b16 %v143
  %v512 = vunpack.c.h.b16 %v143
  %v513 = vunpack.c.l.b16 %v144
  %v514 = vunpack.c.h.b16 %v144
  %v515 = vunpack.c.l.b16 %v145
  %v516 = vunpack.c.h.b16 %v145
  %v517 = vunpack.c.l.b16 %v146
  %v518 = vunpack.c.h.b16 %v146
  %v519 = vunpack.c.l.b16 %v147
  %v520 = vunpack.c.h.b16 %v147
  %v521 = vunpack.c.l.b16 %v148
  %v522 = vunpack.c.h.b16 %v148
  %v523 = vunpack.c.l.b16 %v149
  %v524 = vunpack.c.h.b16 %v149
  %v525 = vunpack.c.l.b16 %v150
  %v526 = vunpack.c.h.b16 %v150
  %v527 = vunpack.c.l.b16 %v151
  %v528 = vunpack.c.h.b16 %v151
  %v529 = vunpack.c.l.b16 %v152
  %v530 = vunpack.c.h.b16 %v152
  %v531 = vunpack.c.l.b16 %v153
  %v532 = vunpack.c.h.b16 %v153
  %v533 = vunpack.c.l.b16 %v154
  %v534 = vunpack.c.h.b16 %v154
  %v535 = vunpack.c.l.b16 %v155
  %v536 = vunpack.c.h.b16 %v155
  %v537 = vunpack.c.l.b16 %v156
  %v538 = vunpack.c.h.b16 %v156
  %v539 = vunpack.c.l.b16 %v157
  %v540 = vunpack.c.h.b16 %v157
  %v541 = vunpack.c.l.b16 %v158
  %v542 = vunpack.c.h.b16 %v158
  %v543 = vunpack.c.l.b16 %v159
  %v544 = vunpack.c.h.b16 %v159
  %v545 = vunpack.c.l.b16 %v160
  %v546 = vunpack.c.h.b16 %v160
  %v547 = vunpack.c.l.b16 %v161
  %v548 = vunpack.c.h.b16 %v161
  %v549 = vunpack.c.l.b16 %v162
  %v550 = vunpack.c.h.b16 %v162
  %v551 = vunpack.c.l.b16 %v163
  %v552 = vunpack.c.h.b16 %v163
  %v553 = vunpack.c.l.b16 %v164
  %v554 = vunpack.c.h.b16 %v164
  %v555 = vunpack.c.l.b16 %v165
  %v556 = vunpack.c.h.b16 %v165
  %v557 = vunpack.c.l.b16 %v166
  %v558 = vunpack.c.h.b16 %v166
  %v559 = vunpack.c.l.b16 %v167
  %v560 = vunpack.c.h.b16 %v167
  %v561 = vunpack.c.l.b16 %v168
  %v562 = vunpack.c.h.b16 %v168
  %v563 = vunpack.c.l.b16 %v169
  %v564 = vunpack.c.h.b16 %v169
  %v565 = vunpack.c.l.b16 %v170
  %v566 = vunpack.c.h.b16 %v170
  %v567 = vpack.c.b16 %v313, %v311
  %v568 = vpack.c.b16 %v314, %v312
  %v569 = vpack.c.b16 %v317, %v315
  %v570 = vpack.c.b16 %v318, %v316
  %v571 = vpack.c.b16 %v321, %v319
  %v572 = vpack.c.b16 %v322, %v320
  %v573 = vpack.c.b16 %v325, %v323
  %v574 = vpack.c.b16 %v326, %v324
  %v575 = vpack.c.b16 %v329, %v327
  %v576 = vpack.c.b16 %v330, %v328
  %v577 = vpack.c.b16 %v333, %v331
  %v578 = vpack.c.b16 %v334, %v332
  %v579 = vpack.c.b16 %v337, %v335
  %v580 = vpack.c.b16 %v338, %v336
  %v581 = vpack.c.b16 %v341, %v339
  %v582 = vpack.c.b16 %v342, %v340
  %v583 = vpack.c.b16 %v345, %v343
  %v584 = vpack.c.b16 %v346, %v344
  %v585 = vpack.c.b16 %v349, %v347
  %v586 = vpack.c.b16 %v350, %v348
  %v587 = vpack.c.b16 %v353, %v351
  %v588 = vpack.c.b16 %v354, %v352
  %v589 = vpack.c.b16 %v357, %v355
  %v590 = vpack.c.b16 %v358, %v356
  %v591 = vpack.c.b16 %v361, %v359
  %v592 = vpack.c.b16 %v362, %v360
  %v593 = vpack.c.b16 %v365, %v363
  %v594 = vpack.c.b16 %v366, %v364
  %v595 = vpack.c.b16 %v369, %v367
  %v596 = vpack.c.b16 %v370, %v368
  %v597 = vpack.c.b16 %v373, %v371
  %v598 = vpack.c.b16 %v374, %v372
  %v599 = vpack.c.b16 %v377, %v375
  %v600 = vpack.c.b16 %v378, %v376
  %v601 = vpack.c.b16 %v381, %v379
  %v602 = vpack.c.b16 %v382, %v380
  %v603 = vpack.c.b16 %v385, %v383
  %v604 = vpack.c.b16 %v386, %v384
  %v605 = vpack.c.b16 %v389, %v387
  %v606 = vpack.c.b16 %v390, %v388
  %v607 = vpack.c.b16 %v393, %v391
  %v608 = vpack.c.b16 %v394, %v392
  %v609 = vpack.c.b16 %v397, %v395
  %v610 = vpack.c.b16 %v398, %v396
  %v611 = vpack.c.b16 %v401, %v399
  %v612 = vpack.c.b16 %v402, %v400
  %v613 = vpack.c.b16 %v405, %v403
  %v614 = vpack.c.b16 %v406, %v404
  %v615 = vpack.c.b16 %v409, %v407
  %v616 = vpack.c.b16 %v410, %v408
  %v617 = vpack.c.b16 %v413, %v411
  %v618 = vpack.c.b16 %v414, %v412
  %v619 = vpack.c.b16 %v417, %v415
  %v620 = vpack.c.b16 %v418, %v416
  %v621 = vpack.c.b16 %v421, %v419
  %v622 = vpack.c.b16 %v422, %v420
  %v623 = vpack.c.b16 %v425, %v423
  %v624 = vpack.c.b16 %v426, %v424
  %v625 = vpack.c.b16 %v429, %v427
  %v626 = vpack.c.b16 %v430, %v428
  %v627 = vpack.c.b16 %v433, %v431
  %v628 = vpack.c.b16 %v434, %v432
  %v629 = vpack.c.b16 %v437, %v435
  %v630 = vpack.c.b16 %v438, %v436
  %v631 = vpack.c.b16 %v441, %v439
  %v632 = vpack.c.b16 %v442, %v440
  %v633 = vpack.c.b16 %v445, %v443
  %v634 = vpack.c.b16 %v446, %v444
  %v635 = vpack.c.b16 %v449, %v447
  %v636 = vpack.c.b16 %v450, %v448
  %v637 = vpack.c.b16 %v453, %v451
  %v638 = vpack.c.b16 %v454, %v452
  %v639 = vpack.c.b16 %v457, %v455
  %v640 = vpack.c.b16 %v458, %v456
  %v641 = vpack.c.b16 %v461, %v459
  %v642 = vpack.c.b16 %v462, %v460
  %v643 = vpack.c.b16 %v465, %v463
  %v644 = vpack.c.b16 %v466, %v464
  %v645 = vpack.c.b16 %v469, %v467
  %v646 = vpack.c.b16 %v470, %v468
  %v647 = vpack.c.b16 %v473, %v471
  %v648 = vpack.c.b16 %v474, %v472
  %v649 = vpack.c.b16 %v477, %v475
  %v650 = vpack.c.b16 %v478, %v476
  %v651 = vpack.c.b16 %v481, %v479
  %v652 = vpack.c.b16 %v482, %v480
  %v653 = vpack.c.b16 %v485, %v483
  %v654 = vpack.c.b16 %v486, %v484
  %v655 = vpack.c.b16 %v489, %v487
  %v656 = vpack.c.b16 %v490, %v488
  %v657 = vpack.c.b16 %v493, %v491
  %v658 = vpack.c.b16 %v494, %v492
  %v659 = vpack.c.b16 %v497, %v495
  %v660 = vpack.c.b16 %v498, %v496
  %v661 = vpack.c.b16 %v501, %v499
  %v662 = vpack.c.b16 %v502, %v500
  %v663 = vpack.c.b16 %v505, %v503
  %v664 = vpack.c.b16 %v506, %v504
  %v665 = vpack.c.b16 %v509, %v507
  %v666 = vpack.c.b16 %v510, %v508
  %v667 = vpack.c.b16 %v513, %v511
  %v668 = vpack.c.b16 %v514, %v512
  %v669 = vpack.c.b16 %v517, %v515
  %v670 = vpack.c.b16 %v518, %v516
  %v671 = vpack.c.b16 %v521, %v519
  %v672 = vpack.c.b16 %v522, %v520
  %v673 = vpack.c.b16 %v525, %v523
  %v674 = vpack.c.b16 %v526, %v524
  %v675 = vpack.c.b16 %v529, %v527
  %v676 = vpack.c.b16 %v530, %v528
  %v677 = vpack.c.b16 %v533, %v531
  %v678 = vpack.c.b16 %v534, %v532
  %v679 = vpack.c.b16 %v537, %v535
  %v680 = vpack.c.b16 %v538, %v536
  %v681 = vpack.c.b16 %v541, %v539
  %v682 = vpack.c.b16 %v542, %v540
  %v683 = vpack.c.b16 %v545, %v543
  %v684 = vpack.c.b16 %v546, %v544
  %v685 = vpack.c.b16 %v549, %v547
  %v686 = vpack.c.b16 %v550, %v548
  %v687 = vpack.c.b16 %v553, %v551
  %v688 = vpack.c.b16 %v554, %v552
  %v689 = vpack.c.b16 %v557, %v555
  %v690 = vpack.c.b16 %v558, %v556
  %v691 = vpack.c.b16 %v561, %v559
  %v692 = vpack.c.b16 %v562, %v560
  %v693 = vpack.c.b16 %v565, %v563
  %v694 = vpack.c.b16 %v566, %v564
  %823 = vmatprep.subr.bf16.mxu0 %v568
  %824 = vmatpush1.bf16.msra.mxu0 %v567
  %825 = vmatprep.subr.bf16.mxu0 %v570
  %826 = vmatpush1.bf16.msra.mxu0 %v569
  %827 = vmatprep.subr.bf16.mxu0 %v572
  %828 = vmatpush1.bf16.msra.mxu0 %v571
  %829 = vmatprep.subr.bf16.mxu0 %v574
  %830 = vmatpush1.bf16.msra.mxu0 %v573
  %831 = vmatprep.subr.bf16.mxu0 %v576
  %832 = vmatpush1.bf16.msra.mxu0 %v575
  %833 = vmatprep.subr.bf16.mxu0 %v578
  %834 = vmatpush1.bf16.msra.mxu0 %v577
  %835 = vmatprep.subr.bf16.mxu0 %v580
  %836 = vmatpush1.bf16.msra.mxu0 %v579
  %837 = vmatprep.subr.bf16.mxu0 %v582
  %838 = vmatpush1.bf16.msra.mxu0 %v581
  %839 = vmatprep.subr.bf16.mxu0 %v584
  %840 = vmatpush1.bf16.msra.mxu0 %v583
  %841 = vmatprep.subr.bf16.mxu0 %v586
  %842 = vmatpush1.bf16.msra.mxu0 %v585
  %843 = vmatprep.subr.bf16.mxu0 %v588
  %844 = vmatpush1.bf16.msra.mxu0 %v587
  %845 = vmatprep.subr.bf16.mxu0 %v590
  %846 = vmatpush1.bf16.msra.mxu0 %v589
  %847 = vmatprep.subr.bf16.mxu0 %v592
  %848 = vmatpush1.bf16.msra.mxu0 %v591
  %849 = vmatprep.subr.bf16.mxu0 %v594
  %850 = vmatpush1.bf16.msra.mxu0 %v593
  %851 = vmatprep.subr.bf16.mxu0 %v596
  %852 = vmatpush1.bf16.msra.mxu0 %v595
  %853 = vmatprep.subr.bf16.mxu0 %v598
  %854 = vmatpush1.bf16.msra.mxu0 %v597
  %855 = vmatprep.mubr.bf16.mxu0 %v36
  %856 = vmatmul.mubr.bf16.gmra.mrb[0].mxu0 %v35
  %v857 = vpop.f32.mrb[0].mxu0
  %v858 = vadd.f32 %v176, %v857
  %v859 = vpop.f32.mrb[0].mxu0
  %v860 = vadd.f32 %v180, %v859
  %v861 = vpop.f32.mrb[0].mxu0
  %v862 = vpop.f32.mrb[0].mxu0
  %863 = vdwg.mxu0
  %864 = vmatprep.subr.bf16.mxu0 %v600
  %865 = vmatpush1.bf16.msra.mxu0 %v599
  %866 = vmatprep.subr.bf16.mxu0 %v602
  %867 = vmatpush1.bf16.msra.mxu0 %v601
  %868 = vmatprep.subr.bf16.mxu0 %v604
  %869 = vmatpush1.bf16.msra.mxu0 %v603
  %870 = vmatprep.subr.bf16.mxu0 %v606
  %871 = vmatpush1.bf16.msra.mxu0 %v605
  %872 = vmatprep.subr.bf16.mxu0 %v608
  %873 = vmatpush1.bf16.msra.mxu0 %v607
  %874 = vmatprep.subr.bf16.mxu0 %v610
  %875 = vmatpush1.bf16.msra.mxu0 %v609
  %876 = vmatprep.subr.bf16.mxu0 %v612
  %877 = vmatpush1.bf16.msra.mxu0 %v611
  %878 = vmatprep.subr.bf16.mxu0 %v614
  %879 = vmatpush1.bf16.msra.mxu0 %v613
  %880 = vmatprep.subr.bf16.mxu0 %v616
  %881 = vmatpush1.bf16.msra.mxu0 %v615
  %882 = vmatprep.subr.bf16.mxu0 %v618
  %883 = vmatpush1.bf16.msra.mxu0 %v617
  %884 = vmatprep.subr.bf16.mxu0 %v620
  %885 = vmatpush1.bf16.msra.mxu0 %v619
  %886 = vmatprep.subr.bf16.mxu0 %v622
  %887 = vmatpush1.bf16.msra.mxu0 %v621
  %888 = vmatprep.subr.bf16.mxu0 %v624
  %889 = vmatpush1.bf16.msra.mxu0 %v623
  %890 = vmatprep.subr.bf16.mxu0 %v626
  %891 = vmatpush1.bf16.msra.mxu0 %v625
  %892 = vmatprep.subr.bf16.mxu0 %v628
  %893 = vmatpush1.bf16.msra.mxu0 %v627
  %894 = vmatprep.subr.bf16.mxu0 %v630
  %895 = vmatpush1.bf16.msra.mxu0 %v629
  %896 = vmatprep.mubr.bf16.mxu0 %v38
  %897 = vmatmul.mubr.bf16.gmra.mrb[0].mxu0 %v37
  %v898 = vpop.f32.mrb[0].mxu0
  %v899 = vadd.f32 %v858, %v898
  %v900 = vpop.f32.mrb[0].mxu0
  %v901 = vadd.f32 %v860, %v900
  %v902 = vpop.f32.mrb[0].mxu0
  %v903 = vpop.f32.mrb[0].mxu0
  %904 = vdwg.mxu0
  %905 = vmatprep.subr.bf16.mxu0 %v632
  %906 = vmatpush1.bf16.msra.mxu0 %v631
  %907 = vmatprep.subr.bf16.mxu0 %v634
  %908 = vmatpush1.bf16.msra.mxu0 %v633
  %909 = vmatprep.subr.bf16.mxu0 %v636
  %910 = vmatpush1.bf16.msra.mxu0 %v635
  %911 = vmatprep.subr.bf16.mxu0 %v638
  %912 = vmatpush1.bf16.msra.mxu0 %v637
  %913 = vmatprep.subr.bf16.mxu0 %v640
  %914 = vmatpush1.bf16.msra.mxu0 %v639
  %915 = vmatprep.subr.bf16.mxu0 %v642
  %916 = vmatpush1.bf16.msra.mxu0 %v641
  %917 = vmatprep.subr.bf16.mxu0 %v644
  %918 = vmatpush1.bf16.msra.mxu0 %v643
  %919 = vmatprep.subr.bf16.mxu0 %v646
  %920 = vmatpush1.bf16.msra.mxu0 %v645
  %921 = vmatprep.subr.bf16.mxu0 %v648
  %922 = vmatpush1.bf16.msra.mxu0 %v647
  %923 = vmatprep.subr.bf16.mxu0 %v650
  %924 = vmatpush1.bf16.msra.mxu0 %v649
  %925 = vmatprep.subr.bf16.mxu0 %v652
  %926 = vmatpush1.bf16.msra.mxu0 %v651
  %927 = vmatprep.subr.bf16.mxu0 %v654
  %928 = vmatpush1.bf16.msra.mxu0 %v653
  %929 = vmatprep.subr.bf16.mxu0 %v656
  %930 = vmatpush1.bf16.msra.mxu0 %v655
  %931 = vmatprep.subr.bf16.mxu0 %v658
  %932 = vmatpush1.bf16.msra.mxu0 %v657
  %933 = vmatprep.subr.bf16.mxu0 %v660
  %934 = vmatpush1.bf16.msra.mxu0 %v659
  %935 = vmatprep.subr.bf16.mxu0 %v662
  %936 = vmatpush1.bf16.msra.mxu0 %v661
  %937 = vmatprep.mubr.bf16.mxu0 %v40
  %938 = vmatmul.mubr.bf16.gmra.mrb[0].mxu0 %v39
  %v939 = vpop.f32.mrb[0].mxu0
  %v940 = vadd.f32 %v899, %v939
  %v941 = vpop.f32.mrb[0].mxu0
  %v942 = vadd.f32 %v901, %v941
  %v943 = vpop.f32.mrb[0].mxu0
  %v944 = vpop.f32.mrb[0].mxu0
  %945 = vdwg.mxu0
  %946 = vmatprep.subr.bf16.mxu0 %v664
  %947 = vmatpush1.bf16.msra.mxu0 %v663
  %948 = vmatprep.subr.bf16.mxu0 %v666
  %949 = vmatpush1.bf16.msra.mxu0 %v665
  %950 = vmatprep.subr.bf16.mxu0 %v668
  %951 = vmatpush1.bf16.msra.mxu0 %v667
  %952 = vmatprep.subr.bf16.mxu0 %v670
  %953 = vmatpush1.bf16.msra.mxu0 %v669
  %954 = vmatprep.subr.bf16.mxu0 %v672
  %955 = vmatpush1.bf16.msra.mxu0 %v671
  %956 = vmatprep.subr.bf16.mxu0 %v674
  %957 = vmatpush1.bf16.msra.mxu0 %v673
  %958 = vmatprep.subr.bf16.mxu0 %v676
  %959 = vmatpush1.bf16.msra.mxu0 %v675
  %960 = vmatprep.subr.bf16.mxu0 %v678
  %961 = vmatpush1.bf16.msra.mxu0 %v677
  %962 = vmatprep.subr.bf16.mxu0 %v680
  %963 = vmatpush1.bf16.msra.mxu0 %v679
  %964 = vmatprep.subr.bf16.mxu0 %v682
  %965 = vmatpush1.bf16.msra.mxu0 %v681
  %966 = vmatprep.subr.bf16.mxu0 %v684
  %967 = vmatpush1.bf16.msra.mxu0 %v683
  %968 = vmatprep.subr.bf16.mxu0 %v686
  %969 = vmatpush1.bf16.msra.mxu0 %v685
  %970 = vmatprep.subr.bf16.mxu0 %v688
  %971 = vmatpush1.bf16.msra.mxu0 %v687
  %972 = vmatprep.subr.bf16.mxu0 %v690
  %973 = vmatpush1.bf16.msra.mxu0 %v689
  %974 = vmatprep.subr.bf16.mxu0 %v692
  %975 = vmatpush1.bf16.msra.mxu0 %v691
  %976 = vmatprep.subr.bf16.mxu0 %v694
  %977 = vmatpush1.bf16.msra.mxu0 %v693
  %978 = vmatprep.mubr.bf16.mxu0 %v42
  %979 = vmatmul.mubr.bf16.gmra.mrb[0].mxu0 %v41
  %v980 = vpop.f32.mrb[0].mxu0
  %v981 = vadd.f32 %v940, %v980
  %v982 = vpop.f32.mrb[0].mxu0
  %v983 = vadd.f32 %v942, %v982
  %v984 = vpop.f32.mrb[0].mxu0
  %v985 = vpop.f32.mrb[0].mxu0
  %986 = vdwg.mxu0
  %v987 = vmax.f32 %v981, 0.0
  %v988 = vmax.f32 %v983, 0.0
  %v989 = vpack.c.bf16 %v987, %v987
  %v990 = vpack.c.bf16 %v988, %v988
  %v991 = vld [vmem:[%s2] sm:$0xff]
  %v992 = vld [vmem:[%s2 + $0x8] sm:$0xff]
  %v993 = vld [vmem:[%s2 + $0x10] sm:$0xff]
  %v994 = vld [vmem:[%s2 + $0x18] sm:$0xff]
  %v995 = vld [vmem:[%s2 + $0x20] sm:$0xff]
  %v996 = vld [vmem:[%s2 + $0x28] sm:$0xff]
  %v997 = vld [vmem:[%s2 + $0x30] sm:$0xff]
  %v998 = vld [vmem:[%s2 + $0x38] sm:$0xff]
  %v999 = vld [vmem:[%s2 + $0x40] sm:$0xff]
  %v1000 = vld [vmem:[%s2 + $0x48] sm:$0xff]
  %v1001 = vld [vmem:[%s2 + $0x50] sm:$0xff]
  %v1002 = vld [vmem:[%s2 + $0x58] sm:$0xff]
  %v1003 = vld [vmem:[%s2 + $0x60] sm:$0xff]
  %v1004 = vld [vmem:[%s2 + $0x68] sm:$0xff]
  %v1005 = vld [vmem:[%s2 + $0x70] sm:$0xff]
  %v1006 = vld [vmem:[%s2 + $0x78] sm:$0xff]
  %v1007 = vld [vmem:[%s2 + $0x80] sm:$0xff]
  %v1008 = vld [vmem:[%s2 + $0x88] sm:$0xff]
  %v1009 = vld [vmem:[%s2 + $0x90] sm:$0xff]
  %v1010 = vld [vmem:[%s2 + $0x98] sm:$0xff]
  %v1011 = vld [vmem:[%s2 + $0xa0] sm:$0xff]
  %v1012 = vld [vmem:[%s2 + $0xa8] sm:$0xff]
  %v1013 = vld [vmem:[%s2 + $0xb0] sm:$0xff]
  %v1014 = vld [vmem:[%s2 + $0xb8] sm:$0xff]
  %v1015 = vld [vmem:[%s2 + $0xc0] sm:$0xff]
  %v1016 = vld [vmem:[%s2 + $0xc8] sm:$0xff]
  %v1017 = vld [vmem:[%s2 + $0xd0] sm:$0xff]
  %v1018 = vld [vmem:[%s2 + $0xd8] sm:$0xff]
  %v1019 = vld [vmem:[%s2 + $0xe0] sm:$0xff]
  %v1020 = vld [vmem:[%s2 + $0xe8] sm:$0xff]
  %v1021 = vld [vmem:[%s2 + $0xf0] sm:$0xff]
  %v1022 = vld [vmem:[%s2 + $0xf8] sm:$0xff]
  %v1023 = vld [vmem:[%s6 + $0x2] sm:$0x3]
  %v1025 = vlaneseq
  %v1026 = vshrl.u32 %v1025, 7
  %v1027 = vsub.s32 0, %v1026
  %v1028 = vrot.slane %v1023, %v1027
  %v1029 = vlaneseq
  %v1030 = vshrl.u32 %v1029, 7
  %v1031 = vsub.s32 1, %v1030
  %v1032 = vrot.slane %v1023, %v1031
  %v1067 = vunpack.c.l.b16 %v991
  %v1068 = vunpack.c.h.b16 %v991
  %v1069 = vunpack.c.l.b16 %v992
  %v1070 = vunpack.c.h.b16 %v992
  %v1071 = vunpack.c.l.b16 %v993
  %v1072 = vunpack.c.h.b16 %v993
  %v1073 = vunpack.c.l.b16 %v994
  %v1074 = vunpack.c.h.b16 %v994
  %v1075 = vunpack.c.l.b16 %v995
  %v1076 = vunpack.c.h.b16 %v995
  %v1077 = vunpack.c.l.b16 %v996
  %v1078 = vunpack.c.h.b16 %v996
  %v1079 = vunpack.c.l.b16 %v997
  %v1080 = vunpack.c.h.b16 %v997
  %v1081 = vunpack.c.l.b16 %v998
  %v1082 = vunpack.c.h.b16 %v998
  %v1083 = vunpack.c.l.b16 %v999
  %v1084 = vunpack.c.h.b16 %v999
  %v1085 = vunpack.c.l.b16 %v1000
  %v1086 = vunpack.c.h.b16 %v1000
  %v1087 = vunpack.c.l.b16 %v1001
  %v1088 = vunpack.c.h.b16 %v1001
  %v1089 = vunpack.c.l.b16 %v1002
  %v1090 = vunpack.c.h.b16 %v1002
  %v1091 = vunpack.c.l.b16 %v1003
  %v1092 = vunpack.c.h.b16 %v1003
  %v1093 = vunpack.c.l.b16 %v1004
  %v1094 = vunpack.c.h.b16 %v1004
  %v1095 = vunpack.c.l.b16 %v1005
  %v1096 = vunpack.c.h.b16 %v1005
  %v1097 = vunpack.c.l.b16 %v1006
  %v1098 = vunpack.c.h.b16 %v1006
  %v1099 = vunpack.c.l.b16 %v1007
  %v1100 = vunpack.c.h.b16 %v1007
  %v1101 = vunpack.c.l.b16 %v1008
  %v1102 = vunpack.c.h.b16 %v1008
  %v1103 = vunpack.c.l.b16 %v1009
  %v1104 = vunpack.c.h.b16 %v1009
  %v1105 = vunpack.c.l.b16 %v1010
  %v1106 = vunpack.c.h.b16 %v1010
  %v1107 = vunpack.c.l.b16 %v1011
  %v1108 = vunpack.c.h.b16 %v1011
  %v1109 = vunpack.c.l.b16 %v1012
  %v1110 = vunpack.c.h.b16 %v1012
  %v1111 = vunpack.c.l.b16 %v1013
  %v1112 = vunpack.c.h.b16 %v1013
  %v1113 = vunpack.c.l.b16 %v1014
  %v1114 = vunpack.c.h.b16 %v1014
  %v1115 = vunpack.c.l.b16 %v1015
  %v1116 = vunpack.c.h.b16 %v1015
  %v1117 = vunpack.c.l.b16 %v1016
  %v1118 = vunpack.c.h.b16 %v1016
  %v1119 = vunpack.c.l.b16 %v1017
  %v1120 = vunpack.c.h.b16 %v1017
  %v1121 = vunpack.c.l.b16 %v1018
  %v1122 = vunpack.c.h.b16 %v1018
  %v1123 = vunpack.c.l.b16 %v1019
  %v1124 = vunpack.c.h.b16 %v1019
  %v1125 = vunpack.c.l.b16 %v1020
  %v1126 = vunpack.c.h.b16 %v1020
  %v1127 = vunpack.c.l.b16 %v1021
  %v1128 = vunpack.c.h.b16 %v1021
  %v1129 = vunpack.c.l.b16 %v1022
  %v1130 = vunpack.c.h.b16 %v1022
  %v1131 = vpack.c.b16 %v1069, %v1067
  %v1132 = vpack.c.b16 %v1070, %v1068
  %v1133 = vpack.c.b16 %v1073, %v1071
  %v1134 = vpack.c.b16 %v1074, %v1072
  %v1135 = vpack.c.b16 %v1077, %v1075
  %v1136 = vpack.c.b16 %v1078, %v1076
  %v1137 = vpack.c.b16 %v1081, %v1079
  %v1138 = vpack.c.b16 %v1082, %v1080
  %v1139 = vpack.c.b16 %v1085, %v1083
  %v1140 = vpack.c.b16 %v1086, %v1084
  %v1141 = vpack.c.b16 %v1089, %v1087
  %v1142 = vpack.c.b16 %v1090, %v1088
  %v1143 = vpack.c.b16 %v1093, %v1091
  %v1144 = vpack.c.b16 %v1094, %v1092
  %v1145 = vpack.c.b16 %v1097, %v1095
  %v1146 = vpack.c.b16 %v1098, %v1096
  %v1147 = vpack.c.b16 %v1101, %v1099
  %v1148 = vpack.c.b16 %v1102, %v1100
  %v1149 = vpack.c.b16 %v1105, %v1103
  %v1150 = vpack.c.b16 %v1106, %v1104
  %v1151 = vpack.c.b16 %v1109, %v1107
  %v1152 = vpack.c.b16 %v1110, %v1108
  %v1153 = vpack.c.b16 %v1113, %v1111
  %v1154 = vpack.c.b16 %v1114, %v1112
  %v1155 = vpack.c.b16 %v1117, %v1115
  %v1156 = vpack.c.b16 %v1118, %v1116
  %v1157 = vpack.c.b16 %v1121, %v1119
  %v1158 = vpack.c.b16 %v1122, %v1120
  %v1159 = vpack.c.b16 %v1125, %v1123
  %v1160 = vpack.c.b16 %v1126, %v1124
  %v1161 = vpack.c.b16 %v1129, %v1127
  %v1162 = vpack.c.b16 %v1130, %v1128
  %1195 = vmatprep.subr.bf16.mxu0 %v1132
  %1196 = vmatpush1.bf16.msra.mxu0 %v1131
  %1197 = vmatprep.subr.bf16.mxu0 %v1134
  %1198 = vmatpush1.bf16.msra.mxu0 %v1133
  %1199 = vmatprep.subr.bf16.mxu0 %v1136
  %1200 = vmatpush1.bf16.msra.mxu0 %v1135
  %1201 = vmatprep.subr.bf16.mxu0 %v1138
  %1202 = vmatpush1.bf16.msra.mxu0 %v1137
  %1203 = vmatprep.subr.bf16.mxu0 %v1140
  %1204 = vmatpush1.bf16.msra.mxu0 %v1139
  %1205 = vmatprep.subr.bf16.mxu0 %v1142
  %1206 = vmatpush1.bf16.msra.mxu0 %v1141
  %1207 = vmatprep.subr.bf16.mxu0 %v1144
  %1208 = vmatpush1.bf16.msra.mxu0 %v1143
  %1209 = vmatprep.subr.bf16.mxu0 %v1146
  %1210 = vmatpush1.bf16.msra.mxu0 %v1145
  %1211 = vmatprep.subr.bf16.mxu0 %v1148
  %1212 = vmatpush1.bf16.msra.mxu0 %v1147
  %1213 = vmatprep.subr.bf16.mxu0 %v1150
  %1214 = vmatpush1.bf16.msra.mxu0 %v1149
  %1215 = vmatprep.subr.bf16.mxu0 %v1152
  %1216 = vmatpush1.bf16.msra.mxu0 %v1151
  %1217 = vmatprep.subr.bf16.mxu0 %v1154
  %1218 = vmatpush1.bf16.msra.mxu0 %v1153
  %1219 = vmatprep.subr.bf16.mxu0 %v1156
  %1220 = vmatpush1.bf16.msra.mxu0 %v1155
  %1221 = vmatprep.subr.bf16.mxu0 %v1158
  %1222 = vmatpush1.bf16.msra.mxu0 %v1157
  %1223 = vmatprep.subr.bf16.mxu0 %v1160
  %1224 = vmatpush1.bf16.msra.mxu0 %v1159
  %1225 = vmatprep.subr.bf16.mxu0 %v1162
  %1226 = vmatpush1.bf16.msra.mxu0 %v1161
  %1227 = vmatprep.mubr.bf16.mxu0 %v990
  %1228 = vmatmul.mubr.bf16.gmra.mrb[0].mxu0 %v989
  %v1229 = vpop.f32.mrb[0].mxu0
  %v1230 = vadd.f32 %v1028, %v1229
  %v1231 = vpop.f32.mrb[0].mxu0
  %v1232 = vadd.f32 %v1032, %v1231
  %v1233 = vpop.f32.mrb[0].mxu0
  %v1234 = vpop.f32.mrb[0].mxu0
  %1235 = vdwg.mxu0
  %v1236 = vmax.f32 %v1230, 0.0
  %v1237 = vmax.f32 %v1232, 0.0
  %v1238 = vpack.c.bf16 %v1236, %v1236
  %v1239 = vpack.c.bf16 %v1237, %v1237
  %v1240 = vld [vmem:[%s3] sm:$0xff]
  %v1241 = vld [vmem:[%s3 + $0x8] sm:$0xff]
  %v1242 = vld [vmem:[%s3 + $0x10] sm:$0xff]
  %v1243 = vld [vmem:[%s3 + $0x18] sm:$0xff]
  %v1244 = vld [vmem:[%s3 + $0x20] sm:$0xff]
  %v1245 = vld [vmem:[%s3 + $0x28] sm:$0xff]
  %v1246 = vld [vmem:[%s3 + $0x30] sm:$0xff]
  %v1247 = vld [vmem:[%s3 + $0x38] sm:$0xff]
  %v1248 = vld [vmem:[%s3 + $0x40] sm:$0xff]
  %v1249 = vld [vmem:[%s3 + $0x48] sm:$0xff]
  %v1250 = vld [vmem:[%s3 + $0x50] sm:$0xff]
  %v1251 = vld [vmem:[%s3 + $0x58] sm:$0xff]
  %v1252 = vld [vmem:[%s3 + $0x60] sm:$0xff]
  %v1253 = vld [vmem:[%s3 + $0x68] sm:$0xff]
  %v1254 = vld [vmem:[%s3 + $0x70] sm:$0xff]
  %v1255 = vld [vmem:[%s3 + $0x78] sm:$0xff]
  %v1256 = vld [vmem:[%s3 + $0x80] sm:$0xff]
  %v1257 = vld [vmem:[%s3 + $0x88] sm:$0xff]
  %v1258 = vld [vmem:[%s3 + $0x90] sm:$0xff]
  %v1259 = vld [vmem:[%s3 + $0x98] sm:$0xff]
  %v1260 = vld [vmem:[%s3 + $0xa0] sm:$0xff]
  %v1261 = vld [vmem:[%s3 + $0xa8] sm:$0xff]
  %v1262 = vld [vmem:[%s3 + $0xb0] sm:$0xff]
  %v1263 = vld [vmem:[%s3 + $0xb8] sm:$0xff]
  %v1264 = vld [vmem:[%s3 + $0xc0] sm:$0xff]
  %v1265 = vld [vmem:[%s3 + $0xc8] sm:$0xff]
  %v1266 = vld [vmem:[%s3 + $0xd0] sm:$0xff]
  %v1267 = vld [vmem:[%s3 + $0xd8] sm:$0xff]
  %v1268 = vld [vmem:[%s3 + $0xe0] sm:$0xff]
  %v1269 = vld [vmem:[%s3 + $0xe8] sm:$0xff]
  %v1270 = vld [vmem:[%s3 + $0xf0] sm:$0xff]
  %v1271 = vld [vmem:[%s3 + $0xf8] sm:$0xff]
  %v1272 = vld [vmem:[%s6 + $0x4] sm:$0x3]
  %v1274 = vlaneseq
  %v1275 = vshrl.u32 %v1274, 7
  %v1276 = vsub.s32 0, %v1275
  %v1277 = vrot.slane %v1272, %v1276
  %v1278 = vlaneseq
  %v1279 = vshrl.u32 %v1278, 7
  %v1280 = vsub.s32 1, %v1279
  %v1281 = vrot.slane %v1272, %v1280
  %v1316 = vunpack.c.l.b16 %v1240
  %v1317 = vunpack.c.h.b16 %v1240
  %v1318 = vunpack.c.l.b16 %v1241
  %v1319 = vunpack.c.h.b16 %v1241
  %v1320 = vunpack.c.l.b16 %v1242
  %v1321 = vunpack.c.h.b16 %v1242
  %v1322 = vunpack.c.l.b16 %v1243
  %v1323 = vunpack.c.h.b16 %v1243
  %v1324 = vunpack.c.l.b16 %v1244
  %v1325 = vunpack.c.h.b16 %v1244
  %v1326 = vunpack.c.l.b16 %v1245
  %v1327 = vunpack.c.h.b16 %v1245
  %v1328 = vunpack.c.l.b16 %v1246
  %v1329 = vunpack.c.h.b16 %v1246
  %v1330 = vunpack.c.l.b16 %v1247
  %v1331 = vunpack.c.h.b16 %v1247
  %v1332 = vunpack.c.l.b16 %v1248
  %v1333 = vunpack.c.h.b16 %v1248
  %v1334 = vunpack.c.l.b16 %v1249
  %v1335 = vunpack.c.h.b16 %v1249
  %v1336 = vunpack.c.l.b16 %v1250
  %v1337 = vunpack.c.h.b16 %v1250
  %v1338 = vunpack.c.l.b16 %v1251
  %v1339 = vunpack.c.h.b16 %v1251
  %v1340 = vunpack.c.l.b16 %v1252
  %v1341 = vunpack.c.h.b16 %v1252
  %v1342 = vunpack.c.l.b16 %v1253
  %v1343 = vunpack.c.h.b16 %v1253
  %v1344 = vunpack.c.l.b16 %v1254
  %v1345 = vunpack.c.h.b16 %v1254
  %v1346 = vunpack.c.l.b16 %v1255
  %v1347 = vunpack.c.h.b16 %v1255
  %v1348 = vunpack.c.l.b16 %v1256
  %v1349 = vunpack.c.h.b16 %v1256
  %v1350 = vunpack.c.l.b16 %v1257
  %v1351 = vunpack.c.h.b16 %v1257
  %v1352 = vunpack.c.l.b16 %v1258
  %v1353 = vunpack.c.h.b16 %v1258
  %v1354 = vunpack.c.l.b16 %v1259
  %v1355 = vunpack.c.h.b16 %v1259
  %v1356 = vunpack.c.l.b16 %v1260
  %v1357 = vunpack.c.h.b16 %v1260
  %v1358 = vunpack.c.l.b16 %v1261
  %v1359 = vunpack.c.h.b16 %v1261
  %v1360 = vunpack.c.l.b16 %v1262
  %v1361 = vunpack.c.h.b16 %v1262
  %v1362 = vunpack.c.l.b16 %v1263
  %v1363 = vunpack.c.h.b16 %v1263
  %v1364 = vunpack.c.l.b16 %v1264
  %v1365 = vunpack.c.h.b16 %v1264
  %v1366 = vunpack.c.l.b16 %v1265
  %v1367 = vunpack.c.h.b16 %v1265
  %v1368 = vunpack.c.l.b16 %v1266
  %v1369 = vunpack.c.h.b16 %v1266
  %v1370 = vunpack.c.l.b16 %v1267
  %v1371 = vunpack.c.h.b16 %v1267
  %v1372 = vunpack.c.l.b16 %v1268
  %v1373 = vunpack.c.h.b16 %v1268
  %v1374 = vunpack.c.l.b16 %v1269
  %v1375 = vunpack.c.h.b16 %v1269
  %v1376 = vunpack.c.l.b16 %v1270
  %v1377 = vunpack.c.h.b16 %v1270
  %v1378 = vunpack.c.l.b16 %v1271
  %v1379 = vunpack.c.h.b16 %v1271
  %v1380 = vpack.c.b16 %v1318, %v1316
  %v1381 = vpack.c.b16 %v1319, %v1317
  %v1382 = vpack.c.b16 %v1322, %v1320
  %v1383 = vpack.c.b16 %v1323, %v1321
  %v1384 = vpack.c.b16 %v1326, %v1324
  %v1385 = vpack.c.b16 %v1327, %v1325
  %v1386 = vpack.c.b16 %v1330, %v1328
  %v1387 = vpack.c.b16 %v1331, %v1329
  %v1388 = vpack.c.b16 %v1334, %v1332
  %v1389 = vpack.c.b16 %v1335, %v1333
  %v1390 = vpack.c.b16 %v1338, %v1336
  %v1391 = vpack.c.b16 %v1339, %v1337
  %v1392 = vpack.c.b16 %v1342, %v1340
  %v1393 = vpack.c.b16 %v1343, %v1341
  %v1394 = vpack.c.b16 %v1346, %v1344
  %v1395 = vpack.c.b16 %v1347, %v1345
  %v1396 = vpack.c.b16 %v1350, %v1348
  %v1397 = vpack.c.b16 %v1351, %v1349
  %v1398 = vpack.c.b16 %v1354, %v1352
  %v1399 = vpack.c.b16 %v1355, %v1353
  %v1400 = vpack.c.b16 %v1358, %v1356
  %v1401 = vpack.c.b16 %v1359, %v1357
  %v1402 = vpack.c.b16 %v1362, %v1360
  %v1403 = vpack.c.b16 %v1363, %v1361
  %v1404 = vpack.c.b16 %v1366, %v1364
  %v1405 = vpack.c.b16 %v1367, %v1365
  %v1406 = vpack.c.b16 %v1370, %v1368
  %v1407 = vpack.c.b16 %v1371, %v1369
  %v1408 = vpack.c.b16 %v1374, %v1372
  %v1409 = vpack.c.b16 %v1375, %v1373
  %v1410 = vpack.c.b16 %v1378, %v1376
  %v1411 = vpack.c.b16 %v1379, %v1377
  %1444 = vmatprep.subr.bf16.mxu0 %v1381
  %1445 = vmatpush1.bf16.msra.mxu0 %v1380
  %1446 = vmatprep.subr.bf16.mxu0 %v1383
  %1447 = vmatpush1.bf16.msra.mxu0 %v1382
  %1448 = vmatprep.subr.bf16.mxu0 %v1385
  %1449 = vmatpush1.bf16.msra.mxu0 %v1384
  %1450 = vmatprep.subr.bf16.mxu0 %v1387
  %1451 = vmatpush1.bf16.msra.mxu0 %v1386
  %1452 = vmatprep.subr.bf16.mxu0 %v1389
  %1453 = vmatpush1.bf16.msra.mxu0 %v1388
  %1454 = vmatprep.subr.bf16.mxu0 %v1391
  %1455 = vmatpush1.bf16.msra.mxu0 %v1390
  %1456 = vmatprep.subr.bf16.mxu0 %v1393
  %1457 = vmatpush1.bf16.msra.mxu0 %v1392
  %1458 = vmatprep.subr.bf16.mxu0 %v1395
  %1459 = vmatpush1.bf16.msra.mxu0 %v1394
  %1460 = vmatprep.subr.bf16.mxu0 %v1397
  %1461 = vmatpush1.bf16.msra.mxu0 %v1396
  %1462 = vmatprep.subr.bf16.mxu0 %v1399
  %1463 = vmatpush1.bf16.msra.mxu0 %v1398
  %1464 = vmatprep.subr.bf16.mxu0 %v1401
  %1465 = vmatpush1.bf16.msra.mxu0 %v1400
  %1466 = vmatprep.subr.bf16.mxu0 %v1403
  %1467 = vmatpush1.bf16.msra.mxu0 %v1402
  %1468 = vmatprep.subr.bf16.mxu0 %v1405
  %1469 = vmatpush1.bf16.msra.mxu0 %v1404
  %1470 = vmatprep.subr.bf16.mxu0 %v1407
  %1471 = vmatpush1.bf16.msra.mxu0 %v1406
  %1472 = vmatprep.subr.bf16.mxu0 %v1409
  %1473 = vmatpush1.bf16.msra.mxu0 %v1408
  %1474 = vmatprep.subr.bf16.mxu0 %v1411
  %1475 = vmatpush1.bf16.msra.mxu0 %v1410
  %1476 = vmatprep.mubr.bf16.mxu0 %v1239
  %1477 = vmatmul.mubr.bf16.gmra.mrb[0].mxu0 %v1238
  %v1478 = vpop.f32.mrb[0].mxu0
  %v1479 = vadd.f32 %v1277, %v1478
  %v1480 = vpop.f32.mrb[0].mxu0
  %v1481 = vadd.f32 %v1281, %v1480
  %v1482 = vpop.f32.mrb[0].mxu0
  %v1483 = vpop.f32.mrb[0].mxu0
  %1484 = vdwg.mxu0
  %v1485 = vmax.f32 %v1479, 0.0
  %v1486 = vmax.f32 %v1481, 0.0
  %v1487 = vpack.c.bf16 %v1485, %v1485
  %v1488 = vpack.c.bf16 %v1486, %v1486
  %v1489 = vld [vmem:[%s4] sm:$0xff]
  %v1490 = vld [vmem:[%s4 + $0x8] sm:$0xff]
  %v1491 = vld [vmem:[%s4 + $0x10] sm:$0xff]
  %v1492 = vld [vmem:[%s4 + $0x18] sm:$0xff]
  %v1493 = vld [vmem:[%s4 + $0x20] sm:$0xff]
  %v1494 = vld [vmem:[%s4 + $0x28] sm:$0xff]
  %v1495 = vld [vmem:[%s4 + $0x30] sm:$0xff]
  %v1496 = vld [vmem:[%s4 + $0x38] sm:$0xff]
  %v1497 = vld [vmem:[%s4 + $0x40] sm:$0xff]
  %v1498 = vld [vmem:[%s4 + $0x48] sm:$0xff]
  %v1499 = vld [vmem:[%s4 + $0x50] sm:$0xff]
  %v1500 = vld [vmem:[%s4 + $0x58] sm:$0xff]
  %v1501 = vld [vmem:[%s4 + $0x60] sm:$0xff]
  %v1502 = vld [vmem:[%s4 + $0x68] sm:$0xff]
  %v1503 = vld [vmem:[%s4 + $0x70] sm:$0xff]
  %v1504 = vld [vmem:[%s4 + $0x78] sm:$0xff]
  %v1505 = vld [vmem:[%s4 + $0x80] sm:$0xff]
  %v1506 = vld [vmem:[%s4 + $0x88] sm:$0xff]
  %v1507 = vld [vmem:[%s4 + $0x90] sm:$0xff]
  %v1508 = vld [vmem:[%s4 + $0x98] sm:$0xff]
  %v1509 = vld [vmem:[%s4 + $0xa0] sm:$0xff]
  %v1510 = vld [vmem:[%s4 + $0xa8] sm:$0xff]
  %v1511 = vld [vmem:[%s4 + $0xb0] sm:$0xff]
  %v1512 = vld [vmem:[%s4 + $0xb8] sm:$0xff]
  %v1513 = vld [vmem:[%s4 + $0xc0] sm:$0xff]
  %v1514 = vld [vmem:[%s4 + $0xc8] sm:$0xff]
  %v1515 = vld [vmem:[%s4 + $0xd0] sm:$0xff]
  %v1516 = vld [vmem:[%s4 + $0xd8] sm:$0xff]
  %v1517 = vld [vmem:[%s4 + $0xe0] sm:$0xff]
  %v1518 = vld [vmem:[%s4 + $0xe8] sm:$0xff]
  %v1519 = vld [vmem:[%s4 + $0xf0] sm:$0xff]
  %v1520 = vld [vmem:[%s4 + $0xf8] sm:$0xff]
  %v1521 = vld [vmem:[%s6 + $0x6] sm:$0x3]
  %v1523 = vlaneseq
  %v1524 = vshrl.u32 %v1523, 7
  %v1525 = vsub.s32 0, %v1524
  %v1526 = vrot.slane %v1521, %v1525
  %v1527 = vlaneseq
  %v1528 = vshrl.u32 %v1527, 7
  %v1529 = vsub.s32 1, %v1528
  %v1530 = vrot.slane %v1521, %v1529
  %v1565 = vunpack.c.l.b16 %v1489
  %v1566 = vunpack.c.h.b16 %v1489
  %v1567 = vunpack.c.l.b16 %v1490
  %v1568 = vunpack.c.h.b16 %v1490
  %v1569 = vunpack.c.l.b16 %v1491
  %v1570 = vunpack.c.h.b16 %v1491
  %v1571 = vunpack.c.l.b16 %v1492
  %v1572 = vunpack.c.h.b16 %v1492
  %v1573 = vunpack.c.l.b16 %v1493
  %v1574 = vunpack.c.h.b16 %v1493
  %v1575 = vunpack.c.l.b16 %v1494
  %v1576 = vunpack.c.h.b16 %v1494
  %v1577 = vunpack.c.l.b16 %v1495
  %v1578 = vunpack.c.h.b16 %v1495
  %v1579 = vunpack.c.l.b16 %v1496
  %v1580 = vunpack.c.h.b16 %v1496
  %v1581 = vunpack.c.l.b16 %v1497
  %v1582 = vunpack.c.h.b16 %v1497
  %v1583 = vunpack.c.l.b16 %v1498
  %v1584 = vunpack.c.h.b16 %v1498
  %v1585 = vunpack.c.l.b16 %v1499
  %v1586 = vunpack.c.h.b16 %v1499
  %v1587 = vunpack.c.l.b16 %v1500
  %v1588 = vunpack.c.h.b16 %v1500
  %v1589 = vunpack.c.l.b16 %v1501
  %v1590 = vunpack.c.h.b16 %v1501
  %v1591 = vunpack.c.l.b16 %v1502
  %v1592 = vunpack.c.h.b16 %v1502
  %v1593 = vunpack.c.l.b16 %v1503
  %v1594 = vunpack.c.h.b16 %v1503
  %v1595 = vunpack.c.l.b16 %v1504
  %v1596 = vunpack.c.h.b16 %v1504
  %v1597 = vunpack.c.l.b16 %v1505
  %v1598 = vunpack.c.h.b16 %v1505
  %v1599 = vunpack.c.l.b16 %v1506
  %v1600 = vunpack.c.h.b16 %v1506
  %v1601 = vunpack.c.l.b16 %v1507
  %v1602 = vunpack.c.h.b16 %v1507
  %v1603 = vunpack.c.l.b16 %v1508
  %v1604 = vunpack.c.h.b16 %v1508
  %v1605 = vunpack.c.l.b16 %v1509
  %v1606 = vunpack.c.h.b16 %v1509
  %v1607 = vunpack.c.l.b16 %v1510
  %v1608 = vunpack.c.h.b16 %v1510
  %v1609 = vunpack.c.l.b16 %v1511
  %v1610 = vunpack.c.h.b16 %v1511
  %v1611 = vunpack.c.l.b16 %v1512
  %v1612 = vunpack.c.h.b16 %v1512
  %v1613 = vunpack.c.l.b16 %v1513
  %v1614 = vunpack.c.h.b16 %v1513
  %v1615 = vunpack.c.l.b16 %v1514
  %v1616 = vunpack.c.h.b16 %v1514
  %v1617 = vunpack.c.l.b16 %v1515
  %v1618 = vunpack.c.h.b16 %v1515
  %v1619 = vunpack.c.l.b16 %v1516
  %v1620 = vunpack.c.h.b16 %v1516
  %v1621 = vunpack.c.l.b16 %v1517
  %v1622 = vunpack.c.h.b16 %v1517
  %v1623 = vunpack.c.l.b16 %v1518
  %v1624 = vunpack.c.h.b16 %v1518
  %v1625 = vunpack.c.l.b16 %v1519
  %v1626 = vunpack.c.h.b16 %v1519
  %v1627 = vunpack.c.l.b16 %v1520
  %v1628 = vunpack.c.h.b16 %v1520
  %v1629 = vpack.c.b16 %v1567, %v1565
  %v1630 = vpack.c.b16 %v1568, %v1566
  %v1631 = vpack.c.b16 %v1571, %v1569
  %v1632 = vpack.c.b16 %v1572, %v1570
  %v1633 = vpack.c.b16 %v1575, %v1573
  %v1634 = vpack.c.b16 %v1576, %v1574
  %v1635 = vpack.c.b16 %v1579, %v1577
  %v1636 = vpack.c.b16 %v1580, %v1578
  %v1637 = vpack.c.b16 %v1583, %v1581
  %v1638 = vpack.c.b16 %v1584, %v1582
  %v1639 = vpack.c.b16 %v1587, %v1585
  %v1640 = vpack.c.b16 %v1588, %v1586
  %v1641 = vpack.c.b16 %v1591, %v1589
  %v1642 = vpack.c.b16 %v1592, %v1590
  %v1643 = vpack.c.b16 %v1595, %v1593
  %v1644 = vpack.c.b16 %v1596, %v1594
  %v1645 = vpack.c.b16 %v1599, %v1597
  %v1646 = vpack.c.b16 %v1600, %v1598
  %v1647 = vpack.c.b16 %v1603, %v1601
  %v1648 = vpack.c.b16 %v1604, %v1602
  %v1649 = vpack.c.b16 %v1607, %v1605
  %v1650 = vpack.c.b16 %v1608, %v1606
  %v1651 = vpack.c.b16 %v1611, %v1609
  %v1652 = vpack.c.b16 %v1612, %v1610
  %v1653 = vpack.c.b16 %v1615, %v1613
  %v1654 = vpack.c.b16 %v1616, %v1614
  %v1655 = vpack.c.b16 %v1619, %v1617
  %v1656 = vpack.c.b16 %v1620, %v1618
  %v1657 = vpack.c.b16 %v1623, %v1621
  %v1658 = vpack.c.b16 %v1624, %v1622
  %v1659 = vpack.c.b16 %v1627, %v1625
  %v1660 = vpack.c.b16 %v1628, %v1626
  %1693 = vmatprep.subr.bf16.mxu0 %v1630
  %1694 = vmatpush1.bf16.msra.mxu0 %v1629
  %1695 = vmatprep.subr.bf16.mxu0 %v1632
  %1696 = vmatpush1.bf16.msra.mxu0 %v1631
  %1697 = vmatprep.subr.bf16.mxu0 %v1634
  %1698 = vmatpush1.bf16.msra.mxu0 %v1633
  %1699 = vmatprep.subr.bf16.mxu0 %v1636
  %1700 = vmatpush1.bf16.msra.mxu0 %v1635
  %1701 = vmatprep.subr.bf16.mxu0 %v1638
  %1702 = vmatpush1.bf16.msra.mxu0 %v1637
  %1703 = vmatprep.subr.bf16.mxu0 %v1640
  %1704 = vmatpush1.bf16.msra.mxu0 %v1639
  %1705 = vmatprep.subr.bf16.mxu0 %v1642
  %1706 = vmatpush1.bf16.msra.mxu0 %v1641
  %1707 = vmatprep.subr.bf16.mxu0 %v1644
  %1708 = vmatpush1.bf16.msra.mxu0 %v1643
  %1709 = vmatprep.subr.bf16.mxu0 %v1646
  %1710 = vmatpush1.bf16.msra.mxu0 %v1645
  %1711 = vmatprep.subr.bf16.mxu0 %v1648
  %1712 = vmatpush1.bf16.msra.mxu0 %v1647
  %1713 = vmatprep.subr.bf16.mxu0 %v1650
  %1714 = vmatpush1.bf16.msra.mxu0 %v1649
  %1715 = vmatprep.subr.bf16.mxu0 %v1652
  %1716 = vmatpush1.bf16.msra.mxu0 %v1651
  %1717 = vmatprep.subr.bf16.mxu0 %v1654
  %1718 = vmatpush1.bf16.msra.mxu0 %v1653
  %1719 = vmatprep.subr.bf16.mxu0 %v1656
  %1720 = vmatpush1.bf16.msra.mxu0 %v1655
  %1721 = vmatprep.subr.bf16.mxu0 %v1658
  %1722 = vmatpush1.bf16.msra.mxu0 %v1657
  %1723 = vmatprep.subr.bf16.mxu0 %v1660
  %1724 = vmatpush1.bf16.msra.mxu0 %v1659
  %1725 = vmatprep.mubr.bf16.mxu0 %v1488
  %1726 = vmatmul.mubr.bf16.gmra.mrb[0].mxu0 %v1487
  %v1727 = vpop.f32.mrb[0].mxu0
  %v1728 = vadd.f32 %v1526, %v1727
  %v1729 = vpop.f32.mrb[0].mxu0
  %v1730 = vadd.f32 %v1530, %v1729
  %v1731 = vpop.f32.mrb[0].mxu0
  %v1732 = vpop.f32.mrb[0].mxu0
  %1733 = vdwg.mxu0
  %v1734 = vmax.f32 %v1728, 0.0
  %v1735 = vmax.f32 %v1730, 0.0
  %v1736 = vpack.c.bf16 %v1734, %v1734
  %v1737 = vpack.c.bf16 %v1735, %v1735
  %v1738 = vld [vmem:[%s5] sm:$0xf]
  %v1739 = vld [vmem:[%s5 + $0x4] sm:$0xf]
  %v1740 = vld [vmem:[%s5 + $0x8] sm:$0xf]
  %v1741 = vld [vmem:[%s5 + $0xc] sm:$0xf]
  %v1742 = vld [vmem:[%s5 + $0x10] sm:$0xf]
  %v1743 = vld [vmem:[%s5 + $0x14] sm:$0xf]
  %v1744 = vld [vmem:[%s5 + $0x18] sm:$0xf]
  %v1745 = vld [vmem:[%s5 + $0x1c] sm:$0xf]
  %v1746 = vld [vmem:[%s5 + $0x20] sm:$0xf]
  %v1747 = vld [vmem:[%s5 + $0x24] sm:$0xf]
  %v1748 = vld [vmem:[%s5 + $0x28] sm:$0xf]
  %v1749 = vld [vmem:[%s5 + $0x2c] sm:$0xf]
  %v1750 = vld [vmem:[%s5 + $0x30] sm:$0xf]
  %v1751 = vld [vmem:[%s5 + $0x34] sm:$0xf]
  %v1752 = vld [vmem:[%s5 + $0x38] sm:$0xf]
  %v1753 = vld [vmem:[%s5 + $0x3c] sm:$0xf]
  %v1754 = vld [vmem:[%s5 + $0x40] sm:$0xf]
  %v1755 = vld [vmem:[%s5 + $0x44] sm:$0xf]
  %v1756 = vld [vmem:[%s5 + $0x48] sm:$0xf]
  %v1757 = vld [vmem:[%s5 + $0x4c] sm:$0xf]
  %v1758 = vld [vmem:[%s5 + $0x50] sm:$0xf]
  %v1759 = vld [vmem:[%s5 + $0x54] sm:$0xf]
  %v1760 = vld [vmem:[%s5 + $0x58] sm:$0xf]
  %v1761 = vld [vmem:[%s5 + $0x5c] sm:$0xf]
  %v1762 = vld [vmem:[%s5 + $0x60] sm:$0xf]
  %v1763 = vld [vmem:[%s5 + $0x64] sm:$0xf]
  %v1764 = vld [vmem:[%s5 + $0x68] sm:$0xf]
  %v1765 = vld [vmem:[%s5 + $0x6c] sm:$0xf]
  %v1766 = vld [vmem:[%s5 + $0x70] sm:$0xf]
  %v1767 = vld [vmem:[%s5 + $0x74] sm:$0xf]
  %v1768 = vld [vmem:[%s5 + $0x78] sm:$0xf]
  %v1769 = vld [vmem:[%s5 + $0x7c] sm:$0xf]
  %v1770 = vld [vmem:[%s6 + $0x8] sm:$0x1]
  %v1772 = vlaneseq
  %v1773 = vshrl.u32 %v1772, 7
  %v1774 = vsub.s32 0, %v1773
  %v1775 = vrot.slane %v1770, %v1774
  %v1809 = vunpack.c.l.b16 %v1738
  %v1810 = vunpack.c.l.b16 %v1739
  %v1811 = vunpack.c.l.b16 %v1740
  %v1812 = vunpack.c.l.b16 %v1741
  %v1813 = vunpack.c.l.b16 %v1742
  %v1814 = vunpack.c.l.b16 %v1743
  %v1815 = vunpack.c.l.b16 %v1744
  %v1816 = vunpack.c.l.b16 %v1745
  %v1817 = vunpack.c.l.b16 %v1746
  %v1818 = vunpack.c.l.b16 %v1747
  %v1819 = vunpack.c.l.b16 %v1748
  %v1820 = vunpack.c.l.b16 %v1749
  %v1821 = vunpack.c.l.b16 %v1750
  %v1822 = vunpack.c.l.b16 %v1751
  %v1823 = vunpack.c.l.b16 %v1752
  %v1824 = vunpack.c.l.b16 %v1753
  %v1825 = vunpack.c.l.b16 %v1754
  %v1826 = vunpack.c.l.b16 %v1755
  %v1827 = vunpack.c.l.b16 %v1756
  %v1828 = vunpack.c.l.b16 %v1757
  %v1829 = vunpack.c.l.b16 %v1758
  %v1830 = vunpack.c.l.b16 %v1759
  %v1831 = vunpack.c.l.b16 %v1760
  %v1832 = vunpack.c.l.b16 %v1761
  %v1833 = vunpack.c.l.b16 %v1762
  %v1834 = vunpack.c.l.b16 %v1763
  %v1835 = vunpack.c.l.b16 %v1764
  %v1836 = vunpack.c.l.b16 %v1765
  %v1837 = vunpack.c.l.b16 %v1766
  %v1838 = vunpack.c.l.b16 %v1767
  %v1839 = vunpack.c.l.b16 %v1768
  %v1840 = vunpack.c.l.b16 %v1769
  %v1841 = vpack.c.b16 %v1810, %v1809
  %v1842 = vpack.c.b16 %v1812, %v1811
  %v1843 = vpack.c.b16 %v1814, %v1813
  %v1844 = vpack.c.b16 %v1816, %v1815
  %v1845 = vpack.c.b16 %v1818, %v1817
  %v1846 = vpack.c.b16 %v1820, %v1819
  %v1847 = vpack.c.b16 %v1822, %v1821
  %v1848 = vpack.c.b16 %v1824, %v1823
  %v1849 = vpack.c.b16 %v1826, %v1825
  %v1850 = vpack.c.b16 %v1828, %v1827
  %v1851 = vpack.c.b16 %v1830, %v1829
  %v1852 = vpack.c.b16 %v1832, %v1831
  %v1853 = vpack.c.b16 %v1834, %v1833
  %v1854 = vpack.c.b16 %v1836, %v1835
  %v1855 = vpack.c.b16 %v1838, %v1837
  %v1856 = vpack.c.b16 %v1840, %v1839
  %1873 = vmatprep.subr.bf16.mxu0 0
  %1874 = vmatpush1.bf16.msra.mxu0 %v1841
  %1875 = vmatprep.subr.bf16.mxu0 0
  %1876 = vmatpush1.bf16.msra.mxu0 %v1842
  %1877 = vmatprep.subr.bf16.mxu0 0
  %1878 = vmatpush1.bf16.msra.mxu0 %v1843
  %1879 = vmatprep.subr.bf16.mxu0 0
  %1880 = vmatpush1.bf16.msra.mxu0 %v1844
  %1881 = vmatprep.subr.bf16.mxu0 0
  %1882 = vmatpush1.bf16.msra.mxu0 %v1845
  %1883 = vmatprep.subr.bf16.mxu0 0
  %1884 = vmatpush1.bf16.msra.mxu0 %v1846
  %1885 = vmatprep.subr.bf16.mxu0 0
  %1886 = vmatpush1.bf16.msra.mxu0 %v1847
  %1887 = vmatprep.subr.bf16.mxu0 0
  %1888 = vmatpush1.bf16.msra.mxu0 %v1848
  %1889 = vmatprep.subr.bf16.mxu0 0
  %1890 = vmatpush1.bf16.msra.mxu0 %v1849
  %1891 = vmatprep.subr.bf16.mxu0 0
  %1892 = vmatpush1.bf16.msra.mxu0 %v1850
  %1893 = vmatprep.subr.bf16.mxu0 0
  %1894 = vmatpush1.bf16.msra.mxu0 %v1851
  %1895 = vmatprep.subr.bf16.mxu0 0
  %1896 = vmatpush1.bf16.msra.mxu0 %v1852
  %1897 = vmatprep.subr.bf16.mxu0 0
  %1898 = vmatpush1.bf16.msra.mxu0 %v1853
  %1899 = vmatprep.subr.bf16.mxu0 0
  %1900 = vmatpush1.bf16.msra.mxu0 %v1854
  %1901 = vmatprep.subr.bf16.mxu0 0
  %1902 = vmatpush1.bf16.msra.mxu0 %v1855
  %1903 = vmatprep.subr.bf16.mxu0 0
  %1904 = vmatpush1.bf16.msra.mxu0 %v1856
  %1905 = vmatprep.mubr.bf16.mxu0 %v1737
  %1906 = vmatmul.mubr.bf16.gmra.mrb[0].mxu0 %v1736
  %v1907 = vpop.f32.mrb[0].mxu0
  %v1908 = vadd.f32 %v1775, %v1907
  %v1909 = vpop.f32.mrb[0].mxu0
  %v1910 = vpop.f32.mrb[0].mxu0
  %v1911 = vpop.f32.mrb[0].mxu0
  %1912 = vdwg.mxu0
  %1913 = vst [vmem:[%s7] sm:$0xff] %v1908
  // Predicated region
  $region30: #{fcnet_forward.1} parent=0 // pred_check
    _
  $region31: #{fcnet_forward.1} parent=0 // pred_check_branch
    %1915 = sbr.rel (0) target = $region33
  $region32: #{fcnet_forward.1} parent=0 // pred_region
    _
  $region33: #{fcnet_forward.1} parent=0 // pred_fallthru
    _
  // Predicated region
  $region34: #{fcnet_forward.1} parent=0 // pred_check
    _
  $region35: #{fcnet_forward.1} parent=0 // pred_check_branch
    %1917 = sbr.rel (0) target = $region37
  $region36: #{fcnet_forward.1} parent=0 // pred_region
    _
  $region37: #{fcnet_forward.1} parent=0 // pred_fallthru
    _

</llo_original>
